<compile_context>
chip_gen: v5e
topology: v5e:2x2
jax: 0.10.0
libtpu: 0.0.40
codegen_flags: <defaults>
</compile_context>

<pallas_src>
import functools

import jax
import jax.numpy as jnp
import numpy as np
from jax import lax
from jax.experimental import pallas as pl
from jax.experimental.pallas import tpu as pltpu

LEAKY_SLOPE = 0.01
# TODO(synk): ConvNet / UNet / ResNet bodies and split_feature are not part of the
# provided source; assumed ConvNet = Conv3x3(pad=1) -> LeakyReLU -> Conv3x3 ->
# LeakyReLU -> Conv3x3 and split_feature(h,'cross') = (h[:,0::2], h[:,1::2]).
# Only the forward / normal_flow path (reverse=False) is implemented.


# ----------------------------- Pallas kernel ------------------------------- #
def _coupling_kernel(z_ref, x_ref, cmask_ref, hmask_ref, logdet_ref,
                     w1_ref, b1_ref, w2_ref, b2_ref, w3_ref, b3_ref,
                     fx_ref, logj_ref, *, hw, img_w, nb, co):
    """Channel-major coupling-layer body.

    z_ref     : (C0, L)  f32   conv-1 input = [mask*x ; cond], L = nb*hw lanes
    x_ref     : (Ci, L)  f32   raw input (Ci == co)
    cmask_ref : (1, L)   f32   checkerboard mask, tiled per sample
    hmask_ref : (9, L)   f32   3x3 tap validity masks, tap = (dy+1)*3 + (dx+1)
    w*_ref    : (Cout, 9*Cin) bf16 im2col weights; b*_ref : (Cout, 1) f32
    fx_ref    : (co, L)  f32   coupled output (channel-major, lane-dense)
    logj_ref  : (nb,1,1) f32   per-sample logJ + logdet
    """
    L = nb * hw

    def conv3x3(a, w_ref, b_ref):
        # a: (Cin, L) f32.  In-bounds taps stay inside each hw-lane sample window;
        # wrap-around / cross-sample bleed only happens at positions the halo mask
        # zeroes, so one roll over the full lane axis is correct even with nb > 1.
        taps = []
        tap = 0
        for dy in (-1, 0, 1):
            for dx in (-1, 0, 1):
                if dy == 0 and dx == 0:
                    taps.append(a)                       # centre: no shift, mask == 1
                else:
                    shift = (-(dy * img_w + dx)) % L     # out[p] = a[p + dy*W + dx]
                    rolled = pltpu.roll(a, shift, axis=1)
                    taps.append(rolled * hmask_ref[tap:tap + 1, :])
                tap += 1
        # Single MXU matmul with K = 9*Cin and a 256-wide (lane-dense) output.
        im2col = jnp.concatenate(taps, axis=0).astype(jnp.bfloat16)   # (9*Cin, L)
        acc = jnp.dot(w_ref[...], im2col, preferred_element_type=jnp.float32)
        return acc + b_ref[...]                                        # (Cout, L) f32

    def leaky_relu(v):
        return jnp.maximum(v, LEAKY_SLOPE * v)

    h = leaky_relu(conv3x3(z_ref[...], w1_ref, b1_ref))   # (Hc, L)
    h = leaky_relu(conv3x3(h, w2_ref, b2_ref))            # (Hc, L)
    h = conv3x3(h, w3_ref, b3_ref)                        # (2*co, L) == [s ; t] rows

    # split_feature(h, 'cross'): conv-3 output channels were pre-permuted in the
    # wrapper so the strided cross split becomes a contiguous row split here.
    s = jax.nn.sigmoid(h[:co, :] + 2.0)                   # (co, L)
    t = h[co:, :]                                         # (co, L)

    x = x_ref[...]                                        # (co, L) f32
    m = cmask_ref[...]                                    # (1, L), broadcasts over rows
    one_m = 1.0 - m
    x_frozen = m * x
    fx = one_m * t + (one_m * x) * jnp.exp(s) + x_frozen
    fx_ref[...] = fx.astype(fx_ref.dtype)

    sm = one_m * s                                        # (co, L)
    for b in range(nb):                                   # per-sample log-det
        blk = sm[:, b * hw:(b + 1) * hw]                  # lane-aligned 256-wide slice
        v = jnp.sum(blk, axis=1, keepdims=True)           # (co, 1)
        v = jnp.sum(v, axis=0, keepdims=True)             # (1, 1)
        logj_ref[b] = v + logdet_ref[b]


# ------------------------------ glue / wrapper ------------------------------ #
def make_checker_mask_flat(H, W, parity):
    """(1, H*W) f32 checkerboard == torch make_checker_mask((1,1,H,W), parity)."""
    y = np.arange(H)[:, None]
    x = np.arange(W)[None, :]
    return jnp.asarray(((y + x + parity) % 2).astype(np.float32).reshape(1, H * W))


def _halo_masks(H, W):
    """(9, H*W) validity masks for the 3x3 SAME-conv taps, tap = (dy+1)*3 + (dx+1)."""
    y = np.arange(H)[:, None]
    x = np.arange(W)[None, :]
    rows = []
    for dy in (-1, 0, 1):
        for dx in (-1, 0, 1):
            ok = (y + dy >= 0) & (y + dy < H) & (x + dx >= 0) & (x + dx < W)
            rows.append(ok.astype(np.float32).reshape(H * W))
    return jnp.asarray(np.stack(rows, axis=0))


def _pick_block_batch(n):
    """Samples folded into the lane axis per grid step.  Batch to amortize per-step
    overhead, but keep >= 2 'parallel' programs when possible so both v7x
    TensorCores get work (harmless on single-TC v5e/v6e)."""
    if n <= 2:
        return 1
    for nb in (8, 6, 5, 4, 3, 2):
        if n % nb == 0 and n // nb >= 2:
            return nb
    return 1


def _to_blocks(a, nb):
    """(N, C, P) -> (N//nb, C, nb*P): fold nb samples into the lane axis."""
    n, c, p = a.shape
    if nb == 1:
        return a
    return a.reshape(n // nb, nb, c, p).transpose(0, 2, 1, 3).reshape(n // nb, c, nb * p)


def _from_blocks(a, nb):
    """(G, C, nb*P) -> (G*nb, C, P)."""
    g, c, lp = a.shape
    if nb == 1:
        return a
    p = lp // nb
    return a.reshape(g, c, nb, p).transpose(0, 2, 1, 3).reshape(g * nb, c, p)


def init_params(key, in_channels, out_channels, hidden_channels):
    c0 = in_channels + in_channels // 3
    ks = jax.random.split(key, 6)

    def conv_w(k, cin, cout):
        bound = 1.0 / np.sqrt(cin * 9)
        return jax.random.uniform(k, (3, 3, cin, cout), jnp.float32, -bound, bound)

    return dict(
        w1=conv_w(ks[0], c0, hidden_channels),
        b1=jax.random.uniform(ks[1], (1, hidden_channels), jnp.float32, -0.1, 0.1),
        w2=conv_w(ks[2], hidden_channels, hidden_channels),
        b2=jax.random.uniform(ks[3], (1, hidden_channels), jnp.float32, -0.1, 0.1),
        w3=conv_w(ks[4], hidden_channels, out_channels * 2),
        b3=jax.random.uniform(ks[5], (1, out_channels * 2), jnp.float32, -0.1, 0.1),
    )


@functools.partial(jax.jit, static_argnames=("parity",))
def checkerboard_normal_flow(x_nchw, logdet, cond_nchw, params, parity):
    x = x_nchw.astype(jnp.float32)
    cond = cond_nchw.astype(jnp.float32)
    N, Ci, H, W = x.shape
    Cc = cond.shape[1]
    C0 = Ci + Cc
    Hc = params["w2"].shape[-1]
    Co = params["w3"].shape[-1] // 2
    P = H * W
    # The coupling output must have x's channel count, so the conv stack emits 2*Ci
    # channels (same implicit requirement as the torch module).
    assert Ci == Co, "MyCheckerboard coupling requires out_channels == in_channels"

    nb = _pick_block_batch(N)
    G = N // nb
    L = nb * P

    cmask = make_checker_mask_flat(H, W, parity)                       # (1, P)
    hmask = _halo_masks(H, W)                                          # (9, P)

    # NCHW -> channel-major (C, H*W) is a free reshape: no transpose, no jnp.pad,
    # no padded-activation HBM round trip.
    x_cm = x.reshape(N, Ci, P)
    cond_cm = cond.reshape(N, Cc, P)
    z_cm = jnp.concatenate([cmask[None, :, :] * x_cm, cond_cm], axis=1)  # (N, C0, P)

    z_blk = _to_blocks(z_cm, nb)                                       # (G, C0, L)
    x_blk = _to_blocks(x_cm, nb)                                       # (G, Ci, L)
    cmask_blk = jnp.tile(cmask, (1, nb))                               # (1, L)
    hmask_blk = jnp.tile(hmask, (1, nb))                               # (9, L)
    logdet3 = logdet.reshape(N, 1, 1).astype(jnp.float32)

    # Conv weights -> channel-major im2col form (Cout, 9*Cin), bf16 MXU operands.
    # Conv-3 output channels pre-permuted so split_feature 'cross' == contiguous rows.
    def to_cm(w):                      # HWIO (3,3,Cin,Cout) -> (Cout, 9*Cin)
        return w.reshape(-1, w.shape[-1]).T.astype(jnp.bfloat16)

    w3p = jnp.concatenate([params["w3"][..., 0::2], params["w3"][..., 1::2]], axis=-1)
    b3p = jnp.concatenate([params["b3"][..., 0::2], params["b3"][..., 1::2]], axis=-1)
    w1_cm, w2_cm, w3_cm = to_cm(params["w1"]), to_cm(params["w2"]), to_cm(w3p)
    b1_cm = params["b1"].reshape(Hc, 1).astype(jnp.float32)
    b2_cm = params["b2"].reshape(Hc, 1).astype(jnp.float32)
    b3_cm = b3p.reshape(2 * Co, 1).astype(jnp.float32)

    flops = 2 * N * P * 9 * (C0 * Hc + Hc * Hc + Hc * 2 * Co)
    transcendentals = 2 * N * P * Co                                   # sigmoid + exp
    bytes_accessed = int(4 * (z_blk.size + x_blk.size + cmask_blk.size + hmask_blk.size
                              + logdet3.size + b1_cm.size + b2_cm.size + b3_cm.size
                              + N * Co * P + N)
                         + 2 * (w1_cm.size + w2_cm.size + w3_cm.size))

    # VMEM budget (blocks + im2col / hidden temporaries, double-buffered, slack);
    # capped at 32 MiB so it fits the scoped default on v5e/v6e and v7x's 64 MiB.
    per_step = (4 * L * (C0 + Ci + 1 + 9 + Co + 9 * max(C0, Hc) + 2 * Hc + 2 * Co)
                + 2 * (w1_cm.size + w2_cm.size + w3_cm.size) + 4096)
    vmem_limit = int(min(32 * 1024 * 1024, max(8 * 1024 * 1024, 4 * per_step)))

    kernel = functools.partial(_coupling_kernel, hw=P, img_w=W, nb=nb, co=Co)

    fx_blk, logj = pl.pallas_call(
        kernel,
        grid=(G,),
        in_specs=[
            pl.BlockSpec((None, C0, L), lambda i: (i, 0, 0)),     # z = [mask*x ; cond]
            pl.BlockSpec((None, Ci, L), lambda i: (i, 0, 0)),     # x
            pl.BlockSpec((1, L), lambda i: (0, 0)),               # checker mask
            pl.BlockSpec((9, L), lambda i: (0, 0)),               # halo masks
            pl.BlockSpec((nb, 1, 1), lambda i: (i, 0, 0)),        # logdet
            pl.BlockSpec((Hc, 9 * C0), lambda i: (0, 0)),         # w1 (bf16)
            pl.BlockSpec((Hc, 1), lambda i: (0, 0)),              # b1
            pl.BlockSpec((Hc, 9 * Hc), lambda i: (0, 0)),         # w2 (bf16)
            pl.BlockSpec((Hc, 1), lambda i: (0, 0)),              # b2
            pl.BlockSpec((2 * Co, 9 * Hc), lambda i: (0, 0)),     # w3 (bf16)
            pl.BlockSpec((2 * Co, 1), lambda i: (0, 0)),          # b3
        ],
        out_specs=[
            pl.BlockSpec((None, Co, L), lambda i: (i, 0, 0)),     # fx (lane-dense)
            pl.BlockSpec((nb, 1, 1), lambda i: (i, 0, 0)),        # logJ + logdet
        ],
        out_shape=[
            jax.ShapeDtypeStruct((G, Co, L), jnp.float32),
            jax.ShapeDtypeStruct((N, 1, 1), jnp.float32),
        ],
        compiler_params=pltpu.CompilerParams(
            dimension_semantics=("parallel",),
            vmem_limit_bytes=vmem_limit,
        ),
        cost_estimate=pl.CostEstimate(
            flops=flops, transcendentals=transcendentals, bytes_accessed=bytes_accessed),
    )(z_blk, x_blk, cmask_blk, hmask_blk, logdet3,
      w1_cm, b1_cm, w2_cm, b2_cm, w3_cm, b3_cm)

    # Channel-major (G, Co, nb*P) unblocks to NCHW with pure reshapes when nb == 1.
    fx = _from_blocks(fx_blk, nb).reshape(N, Co, H, W)
    return fx, logj[:, 0, 0]


# --------------------------- pure-JAX reference ----------------------------- #
def reference_normal_flow(x_nchw, logdet, cond_nchw, params, parity):
    x = jnp.transpose(x_nchw, (0, 2, 3, 1)).astype(jnp.float32)
    cond = jnp.transpose(cond_nchw, (0, 2, 3, 1)).astype(jnp.float32)
    H, W = x.shape[1], x.shape[2]
    mask = make_checker_mask_flat(H, W, parity).reshape(1, H, W, 1)
    x_frozen = mask * x
    x_active = (1.0 - mask) * x
    z = jnp.concatenate([x_frozen, cond], axis=-1)

    def conv(v, w, b):
        return lax.conv_general_dilated(
            v, w, window_strides=(1, 1), padding="SAME",
            dimension_numbers=("NHWC", "HWIO", "NHWC"),
            precision=lax.Precision.HIGHEST) + b.reshape(1, 1, 1, -1)

    def leaky(v):
        return jnp.where(v >= 0.0, v, LEAKY_SLOPE * v)

    h = leaky(conv(z, params["w1"], params["b1"]))
    h = leaky(conv(h, params["w2"], params["b2"]))
    h = conv(h, params["w3"], params["b3"])
    s = jax.nn.sigmoid(h[..., 0::2] + 2.0)
    t = h[..., 1::2]
    fx = (1.0 - mask) * t + x_active * jnp.exp(s) + x_frozen
    logJ = jnp.sum((1.0 - mask) * s, axis=(1, 2, 3))
    return jnp.transpose(fx, (0, 3, 1, 2)), logJ + logdet


# ----------------------------------- main ----------------------------------- #
if __name__ == "__main__":
    in_channels, out_channels, hidden_channels = 3, 3, 16
    H = W = 16
    N = 2
    parity = 0

    key = jax.random.PRNGKey(0)
    kx, kc, kl, kp = jax.random.split(key, 4)
    x = jax.random.normal(kx, (N, in_channels, H, W), jnp.float32)            # NCHW
    cond = jax.random.normal(kc, (N, in_channels // 3, H, W), jnp.float32)    # NCHW
    logdet = jax.random.normal(kl, (N,), jnp.float32)
    params = init_params(kp, in_channels, out_channels, hidden_channels)

    fx, logj = checkerboard_normal_flow(x, logdet, cond, params, parity=parity)
    jax.block_until_ready((fx, logj))

    fx_ref, logj_ref = reference_normal_flow(x, logdet, cond, params, parity)
    # Kernel uses bf16 MXU operands (f32 accumulation) vs the pure-f32 reference,
    # so tolerances cover the ~1e-2-level bf16 quantization noise.
    np.testing.assert_allclose(np.asarray(fx), np.asarray(fx_ref), rtol=2e-2, atol=2e-2)
    np.testing.assert_allclose(np.asarray(logj), np.asarray(logj_ref), rtol=2e-2, atol=2e-2)

    print("KERNEL_OK")
</pallas_src>

<mosaic_0001>
module attributes {stable_mosaic.version = 11 : i64} {
  func.func @_coupling_kernel(%arg0: i32, %arg1: memref<1x4x256xf32, #tpu.memory_space<vmem>>, %arg2: memref<1x3x256xf32, #tpu.memory_space<vmem>>, %arg3: memref<1x256xf32, #tpu.memory_space<vmem>>, %arg4: memref<9x256xf32, #tpu.memory_space<vmem>>, %arg5: memref<1x1x1xf32, #tpu.memory_space<vmem>>, %arg6: memref<16x36xbf16, #tpu.memory_space<vmem>>, %arg7: memref<16x1xf32, #tpu.memory_space<vmem>>, %arg8: memref<16x144xbf16, #tpu.memory_space<vmem>>, %arg9: memref<16x1xf32, #tpu.memory_space<vmem>>, %arg10: memref<6x144xbf16, #tpu.memory_space<vmem>>, %arg11: memref<6x1xf32, #tpu.memory_space<vmem>>, %arg12: memref<1x3x256xf32, #tpu.memory_space<vmem>>, %arg13: memref<1x1x1xf32, #tpu.memory_space<vmem>>) attributes {dimension_semantics = [#tpu.dimension_semantics<parallel>], iteration_bounds = array<i64: 2>, scalar_prefetch = 0 : i64, scratch_operands = 0 : i64, tpu.core_type = #tpu.core_type<tc>, window_params = [{transform_indices = @transform_0, window_bounds = array<i64: 1, 4, 256>}, {transform_indices = @transform_1, window_bounds = array<i64: 1, 3, 256>}, {pipeline_mode = #tpu.pipeline_mode<synchronous>, transform_indices = @transform_2, window_bounds = array<i64: 1, 256>}, {pipeline_mode = #tpu.pipeline_mode<synchronous>, transform_indices = @transform_3, window_bounds = array<i64: 9, 256>}, {transform_indices = @transform_4, window_bounds = array<i64: 1, 1, 1>}, {pipeline_mode = #tpu.pipeline_mode<synchronous>, transform_indices = @transform_5, window_bounds = array<i64: 16, 36>}, {pipeline_mode = #tpu.pipeline_mode<synchronous>, transform_indices = @transform_6, window_bounds = array<i64: 16, 1>}, {pipeline_mode = #tpu.pipeline_mode<synchronous>, transform_indices = @transform_7, window_bounds = array<i64: 16, 144>}, {pipeline_mode = #tpu.pipeline_mode<synchronous>, transform_indices = @transform_8, window_bounds = array<i64: 16, 1>}, {pipeline_mode = #tpu.pipeline_mode<synchronous>, transform_indices = @transform_9, window_bounds = array<i64: 6, 144>}, {pipeline_mode = #tpu.pipeline_mode<synchronous>, transform_indices = @transform_10, window_bounds = array<i64: 6, 1>}, {transform_indices = @transform_11, window_bounds = array<i64: 1, 3, 256>}, {transform_indices = @transform_12, window_bounds = array<i64: 1, 1, 1>}]} {
    %c0 = arith.constant 0 : index
    %c0_0 = arith.constant 0 : index
    %c0_1 = arith.constant 0 : index
    %0 = vector.load %arg1[%c0, %c0_0, %c0_1] : memref<1x4x256xf32, #tpu.memory_space<vmem>>, vector<1x4x256xf32>
    %1 = vector.shape_cast %0 : vector<1x4x256xf32> to vector<4x256xf32>
    %c17_i32 = arith.constant 17 : i32
    %2 = tpu.dynamic_rotate %1 by %c17_i32 dim 1 : vector<4x256xf32>, i32 -> vector<4x256xf32>
    %c0_2 = arith.constant 0 : index
    %c0_3 = arith.constant 0 : index
    %3 = vector.load %arg4[%c0_2, %c0_3] : memref<9x256xf32, #tpu.memory_space<vmem>>, vector<1x256xf32>
    %4 = vector.broadcast %3 : vector<1x256xf32> to vector<4x256xf32>
    %5 = arith.mulf %2, %4 : vector<4x256xf32>
    %c16_i32 = arith.constant 16 : i32
    %6 = tpu.dynamic_rotate %1 by %c16_i32 dim 1 : vector<4x256xf32>, i32 -> vector<4x256xf32>
    %c1 = arith.constant 1 : index
    %c0_4 = arith.constant 0 : index
    %7 = vector.load %arg4[%c1, %c0_4] : memref<9x256xf32, #tpu.memory_space<vmem>>, vector<1x256xf32>
    %8 = vector.broadcast %7 : vector<1x256xf32> to vector<4x256xf32>
    %9 = arith.mulf %6, %8 : vector<4x256xf32>
    %c15_i32 = arith.constant 15 : i32
    %10 = tpu.dynamic_rotate %1 by %c15_i32 dim 1 : vector<4x256xf32>, i32 -> vector<4x256xf32>
    %c2 = arith.constant 2 : index
    %c0_5 = arith.constant 0 : index
    %11 = vector.load %arg4[%c2, %c0_5] : memref<9x256xf32, #tpu.memory_space<vmem>>, vector<1x256xf32>
    %12 = vector.broadcast %11 : vector<1x256xf32> to vector<4x256xf32>
    %13 = arith.mulf %10, %12 : vector<4x256xf32>
    %c1_i32 = arith.constant 1 : i32
    %14 = tpu.dynamic_rotate %1 by %c1_i32 dim 1 : vector<4x256xf32>, i32 -> vector<4x256xf32>
    %c3 = arith.constant 3 : index
    %c0_6 = arith.constant 0 : index
    %15 = vector.load %arg4[%c3, %c0_6] : memref<9x256xf32, #tpu.memory_space<vmem>>, vector<1x256xf32>
    %16 = vector.broadcast %15 : vector<1x256xf32> to vector<4x256xf32>
    %17 = arith.mulf %14, %16 : vector<4x256xf32>
    %c255_i32 = arith.constant 255 : i32
    %18 = tpu.dynamic_rotate %1 by %c255_i32 dim 1 : vector<4x256xf32>, i32 -> vector<4x256xf32>
    %c5 = arith.constant 5 : index
    %c0_7 = arith.constant 0 : index
    %19 = vector.load %arg4[%c5, %c0_7] : memref<9x256xf32, #tpu.memory_space<vmem>>, vector<1x256xf32>
    %20 = vector.broadcast %19 : vector<1x256xf32> to vector<4x256xf32>
    %21 = arith.mulf %18, %20 : vector<4x256xf32>
    %c241_i32 = arith.constant 241 : i32
    %22 = tpu.dynamic_rotate %1 by %c241_i32 dim 1 : vector<4x256xf32>, i32 -> vector<4x256xf32>
    %c6 = arith.constant 6 : index
    %c0_8 = arith.constant 0 : index
    %23 = vector.load %arg4[%c6, %c0_8] : memref<9x256xf32, #tpu.memory_space<vmem>>, vector<1x256xf32>
    %24 = vector.broadcast %23 : vector<1x256xf32> to vector<4x256xf32>
    %25 = arith.mulf %22, %24 : vector<4x256xf32>
    %c240_i32 = arith.constant 240 : i32
    %26 = tpu.dynamic_rotate %1 by %c240_i32 dim 1 : vector<4x256xf32>, i32 -> vector<4x256xf32>
    %c7 = arith.constant 7 : index
    %c0_9 = arith.constant 0 : index
    %27 = vector.load %arg4[%c7, %c0_9] : memref<9x256xf32, #tpu.memory_space<vmem>>, vector<1x256xf32>
    %28 = vector.broadcast %27 : vector<1x256xf32> to vector<4x256xf32>
    %29 = arith.mulf %26, %28 : vector<4x256xf32>
    %c239_i32 = arith.constant 239 : i32
    %30 = tpu.dynamic_rotate %1 by %c239_i32 dim 1 : vector<4x256xf32>, i32 -> vector<4x256xf32>
    %c8 = arith.constant 8 : index
    %c0_10 = arith.constant 0 : index
    %31 = vector.load %arg4[%c8, %c0_10] : memref<9x256xf32, #tpu.memory_space<vmem>>, vector<1x256xf32>
    %32 = vector.broadcast %31 : vector<1x256xf32> to vector<4x256xf32>
    %33 = arith.mulf %30, %32 : vector<4x256xf32>
    %34 = tpu.concatenate %5, %9, %13, %17, %1, %21, %25, %29, %33 in 0 : vector<4x256xf32>, vector<4x256xf32>, vector<4x256xf32>, vector<4x256xf32>, vector<4x256xf32>, vector<4x256xf32>, vector<4x256xf32>, vector<4x256xf32>, vector<4x256xf32> -> vector<36x256xf32>
    %35 = arith.truncf %34 : vector<36x256xf32> to vector<36x256xbf16>
    %c0_11 = arith.constant 0 : index
    %c0_12 = arith.constant 0 : index
    %36 = vector.load %arg6[%c0_11, %c0_12] : memref<16x36xbf16, #tpu.memory_space<vmem>>, vector<16x36xbf16>
    %cst = arith.constant dense<0.000000e+00> : vector<16x256xf32>
    %37 = tpu.matmul %36, %35, %cst {dimension_numbers = #tpu.dot_dimension_numbers<[1], [0], [0], [1], [0, 0, 1, 1], [], []>} : vector<16x36xbf16>, vector<36x256xbf16>, vector<16x256xf32> -> vector<16x256xf32>
    %c0_13 = arith.constant 0 : index
    %c0_14 = arith.constant 0 : index
    %38 = vector.load %arg7[%c0_13, %c0_14] : memref<16x1xf32, #tpu.memory_space<vmem>>, vector<16x1xf32>
    %39 = vector.broadcast %38 : vector<16x1xf32> to vector<16x256xf32>
    %40 = arith.addf %37, %39 : vector<16x256xf32>
    %cst_15 = arith.constant 0.00999999977 : f32
    %41 = vector.broadcast %cst_15 : f32 to vector<16x256xf32>
    %42 = arith.mulf %41, %40 : vector<16x256xf32>
    %43 = arith.maximumf %40, %42 : vector<16x256xf32>
    %c17_i32_16 = arith.constant 17 : i32
    %44 = tpu.dynamic_rotate %43 by %c17_i32_16 dim 1 : vector<16x256xf32>, i32 -> vector<16x256xf32>
    %c0_17 = arith.constant 0 : index
    %c0_18 = arith.constant 0 : index
    %45 = vector.load %arg4[%c0_17, %c0_18] : memref<9x256xf32, #tpu.memory_space<vmem>>, vector<1x256xf32>
    %46 = vector.broadcast %45 : vector<1x256xf32> to vector<16x256xf32>
    %47 = arith.mulf %44, %46 : vector<16x256xf32>
    %c16_i32_19 = arith.constant 16 : i32
    %48 = tpu.dynamic_rotate %43 by %c16_i32_19 dim 1 : vector<16x256xf32>, i32 -> vector<16x256xf32>
    %c1_20 = arith.constant 1 : index
    %c0_21 = arith.constant 0 : index
    %49 = vector.load %arg4[%c1_20, %c0_21] : memref<9x256xf32, #tpu.memory_space<vmem>>, vector<1x256xf32>
    %50 = vector.broadcast %49 : vector<1x256xf32> to vector<16x256xf32>
    %51 = arith.mulf %48, %50 : vector<16x256xf32>
    %c15_i32_22 = arith.constant 15 : i32
    %52 = tpu.dynamic_rotate %43 by %c15_i32_22 dim 1 : vector<16x256xf32>, i32 -> vector<16x256xf32>
    %c2_23 = arith.constant 2 : index
    %c0_24 = arith.constant 0 : index
    %53 = vector.load %arg4[%c2_23, %c0_24] : memref<9x256xf32, #tpu.memory_space<vmem>>, vector<1x256xf32>
    %54 = vector.broadcast %53 : vector<1x256xf32> to vector<16x256xf32>
    %55 = arith.mulf %52, %54 : vector<16x256xf32>
    %c1_i32_25 = arith.constant 1 : i32
    %56 = tpu.dynamic_rotate %43 by %c1_i32_25 dim 1 : vector<16x256xf32>, i32 -> vector<16x256xf32>
    %c3_26 = arith.constant 3 : index
    %c0_27 = arith.constant 0 : index
    %57 = vector.load %arg4[%c3_26, %c0_27] : memref<9x256xf32, #tpu.memory_space<vmem>>, vector<1x256xf32>
    %58 = vector.broadcast %57 : vector<1x256xf32> to vector<16x256xf32>
    %59 = arith.mulf %56, %58 : vector<16x256xf32>
    %c255_i32_28 = arith.constant 255 : i32
    %60 = tpu.dynamic_rotate %43 by %c255_i32_28 dim 1 : vector<16x256xf32>, i32 -> vector<16x256xf32>
    %c5_29 = arith.constant 5 : index
    %c0_30 = arith.constant 0 : index
    %61 = vector.load %arg4[%c5_29, %c0_30] : memref<9x256xf32, #tpu.memory_space<vmem>>, vector<1x256xf32>
    %62 = vector.broadcast %61 : vector<1x256xf32> to vector<16x256xf32>
    %63 = arith.mulf %60, %62 : vector<16x256xf32>
    %c241_i32_31 = arith.constant 241 : i32
    %64 = tpu.dynamic_rotate %43 by %c241_i32_31 dim 1 : vector<16x256xf32>, i32 -> vector<16x256xf32>
    %c6_32 = arith.constant 6 : index
    %c0_33 = arith.constant 0 : index
    %65 = vector.load %arg4[%c6_32, %c0_33] : memref<9x256xf32, #tpu.memory_space<vmem>>, vector<1x256xf32>
    %66 = vector.broadcast %65 : vector<1x256xf32> to vector<16x256xf32>
    %67 = arith.mulf %64, %66 : vector<16x256xf32>
    %c240_i32_34 = arith.constant 240 : i32
    %68 = tpu.dynamic_rotate %43 by %c240_i32_34 dim 1 : vector<16x256xf32>, i32 -> vector<16x256xf32>
    %c7_35 = arith.constant 7 : index
    %c0_36 = arith.constant 0 : index
    %69 = vector.load %arg4[%c7_35, %c0_36] : memref<9x256xf32, #tpu.memory_space<vmem>>, vector<1x256xf32>
    %70 = vector.broadcast %69 : vector<1x256xf32> to vector<16x256xf32>
    %71 = arith.mulf %68, %70 : vector<16x256xf32>
    %c239_i32_37 = arith.constant 239 : i32
    %72 = tpu.dynamic_rotate %43 by %c239_i32_37 dim 1 : vector<16x256xf32>, i32 -> vector<16x256xf32>
    %c8_38 = arith.constant 8 : index
    %c0_39 = arith.constant 0 : index
    %73 = vector.load %arg4[%c8_38, %c0_39] : memref<9x256xf32, #tpu.memory_space<vmem>>, vector<1x256xf32>
    %74 = vector.broadcast %73 : vector<1x256xf32> to vector<16x256xf32>
    %75 = arith.mulf %72, %74 : vector<16x256xf32>
    %76 = tpu.concatenate %47, %51, %55, %59, %43, %63, %67, %71, %75 in 0 : vector<16x256xf32>, vector<16x256xf32>, vector<16x256xf32>, vector<16x256xf32>, vector<16x256xf32>, vector<16x256xf32>, vector<16x256xf32>, vector<16x256xf32>, vector<16x256xf32> -> vector<144x256xf32>
    %77 = arith.truncf %76 : vector<144x256xf32> to vector<144x256xbf16>
    %c0_40 = arith.constant 0 : index
    %c0_41 = arith.constant 0 : index
    %78 = vector.load %arg8[%c0_40, %c0_41] : memref<16x144xbf16, #tpu.memory_space<vmem>>, vector<16x144xbf16>
    %cst_42 = arith.constant dense<0.000000e+00> : vector<16x256xf32>
    %79 = tpu.matmul %78, %77, %cst_42 {dimension_numbers = #tpu.dot_dimension_numbers<[1], [0], [0], [1], [0, 0, 1, 1], [], []>} : vector<16x144xbf16>, vector<144x256xbf16>, vector<16x256xf32> -> vector<16x256xf32>
    %c0_43 = arith.constant 0 : index
    %c0_44 = arith.constant 0 : index
    %80 = vector.load %arg9[%c0_43, %c0_44] : memref<16x1xf32, #tpu.memory_space<vmem>>, vector<16x1xf32>
    %81 = vector.broadcast %80 : vector<16x1xf32> to vector<16x256xf32>
    %82 = arith.addf %79, %81 : vector<16x256xf32>
    %cst_45 = arith.constant 0.00999999977 : f32
    %83 = vector.broadcast %cst_45 : f32 to vector<16x256xf32>
    %84 = arith.mulf %83, %82 : vector<16x256xf32>
    %85 = arith.maximumf %82, %84 : vector<16x256xf32>
    %c17_i32_46 = arith.constant 17 : i32
    %86 = tpu.dynamic_rotate %85 by %c17_i32_46 dim 1 : vector<16x256xf32>, i32 -> vector<16x256xf32>
    %c0_47 = arith.constant 0 : index
    %c0_48 = arith.constant 0 : index
    %87 = vector.load %arg4[%c0_47, %c0_48] : memref<9x256xf32, #tpu.memory_space<vmem>>, vector<1x256xf32>
    %88 = vector.broadcast %87 : vector<1x256xf32> to vector<16x256xf32>
    %89 = arith.mulf %86, %88 : vector<16x256xf32>
    %c16_i32_49 = arith.constant 16 : i32
    %90 = tpu.dynamic_rotate %85 by %c16_i32_49 dim 1 : vector<16x256xf32>, i32 -> vector<16x256xf32>
    %c1_50 = arith.constant 1 : index
    %c0_51 = arith.constant 0 : index
    %91 = vector.load %arg4[%c1_50, %c0_51] : memref<9x256xf32, #tpu.memory_space<vmem>>, vector<1x256xf32>
    %92 = vector.broadcast %91 : vector<1x256xf32> to vector<16x256xf32>
    %93 = arith.mulf %90, %92 : vector<16x256xf32>
    %c15_i32_52 = arith.constant 15 : i32
    %94 = tpu.dynamic_rotate %85 by %c15_i32_52 dim 1 : vector<16x256xf32>, i32 -> vector<16x256xf32>
    %c2_53 = arith.constant 2 : index
    %c0_54 = arith.constant 0 : index
    %95 = vector.load %arg4[%c2_53, %c0_54] : memref<9x256xf32, #tpu.memory_space<vmem>>, vector<1x256xf32>
    %96 = vector.broadcast %95 : vector<1x256xf32> to vector<16x256xf32>
    %97 = arith.mulf %94, %96 : vector<16x256xf32>
    %c1_i32_55 = arith.constant 1 : i32
    %98 = tpu.dynamic_rotate %85 by %c1_i32_55 dim 1 : vector<16x256xf32>, i32 -> vector<16x256xf32>
    %c3_56 = arith.constant 3 : index
    %c0_57 = arith.constant 0 : index
    %99 = vector.load %arg4[%c3_56, %c0_57] : memref<9x256xf32, #tpu.memory_space<vmem>>, vector<1x256xf32>
    %100 = vector.broadcast %99 : vector<1x256xf32> to vector<16x256xf32>
    %101 = arith.mulf %98, %100 : vector<16x256xf32>
    %c255_i32_58 = arith.constant 255 : i32
    %102 = tpu.dynamic_rotate %85 by %c255_i32_58 dim 1 : vector<16x256xf32>, i32 -> vector<16x256xf32>
    %c5_59 = arith.constant 5 : index
    %c0_60 = arith.constant 0 : index
    %103 = vector.load %arg4[%c5_59, %c0_60] : memref<9x256xf32, #tpu.memory_space<vmem>>, vector<1x256xf32>
    %104 = vector.broadcast %103 : vector<1x256xf32> to vector<16x256xf32>
    %105 = arith.mulf %102, %104 : vector<16x256xf32>
    %c241_i32_61 = arith.constant 241 : i32
    %106 = tpu.dynamic_rotate %85 by %c241_i32_61 dim 1 : vector<16x256xf32>, i32 -> vector<16x256xf32>
    %c6_62 = arith.constant 6 : index
    %c0_63 = arith.constant 0 : index
    %107 = vector.load %arg4[%c6_62, %c0_63] : memref<9x256xf32, #tpu.memory_space<vmem>>, vector<1x256xf32>
    %108 = vector.broadcast %107 : vector<1x256xf32> to vector<16x256xf32>
    %109 = arith.mulf %106, %108 : vector<16x256xf32>
    %c240_i32_64 = arith.constant 240 : i32
    %110 = tpu.dynamic_rotate %85 by %c240_i32_64 dim 1 : vector<16x256xf32>, i32 -> vector<16x256xf32>
    %c7_65 = arith.constant 7 : index
    %c0_66 = arith.constant 0 : index
    %111 = vector.load %arg4[%c7_65, %c0_66] : memref<9x256xf32, #tpu.memory_space<vmem>>, vector<1x256xf32>
    %112 = vector.broadcast %111 : vector<1x256xf32> to vector<16x256xf32>
    %113 = arith.mulf %110, %112 : vector<16x256xf32>
    %c239_i32_67 = arith.constant 239 : i32
    %114 = tpu.dynamic_rotate %85 by %c239_i32_67 dim 1 : vector<16x256xf32>, i32 -> vector<16x256xf32>
    %c8_68 = arith.constant 8 : index
    %c0_69 = arith.constant 0 : index
    %115 = vector.load %arg4[%c8_68, %c0_69] : memref<9x256xf32, #tpu.memory_space<vmem>>, vector<1x256xf32>
    %116 = vector.broadcast %115 : vector<1x256xf32> to vector<16x256xf32>
    %117 = arith.mulf %114, %116 : vector<16x256xf32>
    %118 = tpu.concatenate %89, %93, %97, %101, %85, %105, %109, %113, %117 in 0 : vector<16x256xf32>, vector<16x256xf32>, vector<16x256xf32>, vector<16x256xf32>, vector<16x256xf32>, vector<16x256xf32>, vector<16x256xf32>, vector<16x256xf32>, vector<16x256xf32> -> vector<144x256xf32>
    %119 = arith.truncf %118 : vector<144x256xf32> to vector<144x256xbf16>
    %c0_70 = arith.constant 0 : index
    %c0_71 = arith.constant 0 : index
    %120 = vector.load %arg10[%c0_70, %c0_71] : memref<6x144xbf16, #tpu.memory_space<vmem>>, vector<6x144xbf16>
    %cst_72 = arith.constant dense<0.000000e+00> : vector<6x256xf32>
    %121 = tpu.matmul %120, %119, %cst_72 {dimension_numbers = #tpu.dot_dimension_numbers<[1], [0], [0], [1], [0, 0, 1, 1], [], []>} : vector<6x144xbf16>, vector<144x256xbf16>, vector<6x256xf32> -> vector<6x256xf32>
    %c0_73 = arith.constant 0 : index
    %c0_74 = arith.constant 0 : index
    %122 = vector.load %arg11[%c0_73, %c0_74] : memref<6x1xf32, #tpu.memory_space<vmem>>, vector<6x1xf32>
    %123 = vector.broadcast %122 : vector<6x1xf32> to vector<6x256xf32>
    %124 = arith.addf %121, %123 : vector<6x256xf32>
    %125 = vector.extract_strided_slice %124 {offsets = [0, 0], sizes = [3, 256], strides = [1, 1]} : vector<6x256xf32> to vector<3x256xf32>
    %cst_75 = arith.constant 2.000000e+00 : f32
    %126 = vector.broadcast %cst_75 : f32 to vector<3x256xf32>
    %127 = arith.addf %125, %126 : vector<3x256xf32>
    %128 = arith.negf %127 : vector<3x256xf32>
    %129 = math.exp %128 : vector<3x256xf32>
    %cst_76 = arith.constant 1.000000e+00 : f32
    %130 = vector.broadcast %cst_76 : f32 to vector<3x256xf32>
    %131 = arith.addf %130, %129 : vector<3x256xf32>
    %132 = arith.divf %130, %131 : vector<3x256xf32>
    %133 = vector.extract_strided_slice %124 {offsets = [3, 0], sizes = [3, 256], strides = [1, 1]} : vector<6x256xf32> to vector<3x256xf32>
    %c0_77 = arith.constant 0 : index
    %c0_78 = arith.constant 0 : index
    %c0_79 = arith.constant 0 : index
    %134 = vector.load %arg2[%c0_77, %c0_78, %c0_79] : memref<1x3x256xf32, #tpu.memory_space<vmem>>, vector<1x3x256xf32>
    %135 = vector.shape_cast %134 : vector<1x3x256xf32> to vector<3x256xf32>
    %c0_80 = arith.constant 0 : index
    %c0_81 = arith.constant 0 : index
    %136 = vector.load %arg3[%c0_80, %c0_81] : memref<1x256xf32, #tpu.memory_space<vmem>>, vector<1x256xf32>
    %cst_82 = arith.constant 1.000000e+00 : f32
    %137 = vector.broadcast %cst_82 : f32 to vector<1x256xf32>
    %138 = arith.subf %137, %136 : vector<1x256xf32>
    %139 = vector.broadcast %136 : vector<1x256xf32> to vector<3x256xf32>
    %140 = arith.mulf %139, %135 : vector<3x256xf32>
    %141 = vector.broadcast %138 : vector<1x256xf32> to vector<3x256xf32>
    %142 = arith.mulf %141, %133 : vector<3x256xf32>
    %143 = vector.broadcast %138 : vector<1x256xf32> to vector<3x256xf32>
    %144 = arith.mulf %143, %135 : vector<3x256xf32>
    %145 = math.exp %132 : vector<3x256xf32>
    %146 = arith.mulf %144, %145 : vector<3x256xf32>
    %147 = arith.addf %142, %146 : vector<3x256xf32>
    %148 = arith.addf %147, %140 : vector<3x256xf32>
    %c0_83 = arith.constant 0 : index
    %c0_84 = arith.constant 0 : index
    %c0_85 = arith.constant 0 : index
    %149 = vector.load %arg12[%c0_83, %c0_84, %c0_85] : memref<1x3x256xf32, #tpu.memory_space<vmem>>, vector<1x3x256xf32>
    %150 = vector.shape_cast %149 : vector<1x3x256xf32> to vector<3x256xf32>
    %151 = vector.shape_cast %148 : vector<3x256xf32> to vector<1x3x256xf32>
    tpu.vector_store %arg12[%c0_83, %c0_84, %c0_85], %151 {strides = array<i32>} : memref<1x3x256xf32, #tpu.memory_space<vmem>>, vector<1x3x256xf32>,
    %152 = vector.broadcast %138 : vector<1x256xf32> to vector<3x256xf32>
    %153 = arith.mulf %152, %132 : vector<3x256xf32>
    %cst_86 = arith.constant dense<0.000000e+00> : vector<3xf32>
    %154 = vector.multi_reduction <add>, %153, %cst_86 [1] : vector<3x256xf32> to vector<3xf32>
    %155 = vector.shape_cast %154 : vector<3xf32> to vector<3x1xf32>
    %cst_87 = arith.constant dense<0.000000e+00> : vector<1xf32>
    %156 = vector.multi_reduction <add>, %155, %cst_87 [0] : vector<3x1xf32> to vector<1xf32>
    %157 = vector.shape_cast %156 : vector<1xf32> to vector<1x1xf32>
    %c0_88 = arith.constant 0 : index
    %c0_89 = arith.constant 0 : index
    %c0_90 = arith.constant 0 : index
    %158 = vector.load %arg5[%c0_88, %c0_89, %c0_90] : memref<1x1x1xf32, #tpu.memory_space<vmem>>, vector<1x1x1xf32>
    %159 = vector.shape_cast %158 : vector<1x1x1xf32> to vector<1x1xf32>
    %160 = arith.addf %157, %159 : vector<1x1xf32>
    %c0_91 = arith.constant 0 : index
    %c0_92 = arith.constant 0 : index
    %c0_93 = arith.constant 0 : index
    %161 = vector.load %arg13[%c0_91, %c0_92, %c0_93] : memref<1x1x1xf32, #tpu.memory_space<vmem>>, vector<1x1x1xf32>
    %162 = vector.shape_cast %161 : vector<1x1x1xf32> to vector<1x1xf32>
    %163 = vector.shape_cast %160 : vector<1x1xf32> to vector<1x1x1xf32>
    tpu.vector_store %arg13[%c0_91, %c0_92, %c0_93], %163 {strides = array<i32>} : memref<1x1x1xf32, #tpu.memory_space<vmem>>, vector<1x1x1xf32>,
    return
  }
  func.func @transform_0(%arg0: i32) -> (i32, i32, i32) {
    %c0_i32 = arith.constant 0 : i32
    %c0_i32_0 = arith.constant 0 : i32
    %c0_i32_1 = arith.constant 0 : i32
    return %arg0, %c0_i32, %c0_i32_0 : i32, i32, i32
  }
  func.func @transform_1(%arg0: i32) -> (i32, i32, i32) {
    %c0_i32 = arith.constant 0 : i32
    %c0_i32_0 = arith.constant 0 : i32
    %c0_i32_1 = arith.constant 0 : i32
    return %arg0, %c0_i32, %c0_i32_0 : i32, i32, i32
  }
  func.func @transform_2(%arg0: i32) -> (i32, i32) {
    %c0_i32 = arith.constant 0 : i32
    %c0_i32_0 = arith.constant 0 : i32
    %c0_i32_1 = arith.constant 0 : i32
    return %c0_i32, %c0_i32_0 : i32, i32
  }
  func.func @transform_3(%arg0: i32) -> (i32, i32) {
    %c0_i32 = arith.constant 0 : i32
    %c0_i32_0 = arith.constant 0 : i32
    %c0_i32_1 = arith.constant 0 : i32
    return %c0_i32, %c0_i32_0 : i32, i32
  }
  func.func @transform_4(%arg0: i32) -> (i32, i32, i32) {
    %c0_i32 = arith.constant 0 : i32
    %c0_i32_0 = arith.constant 0 : i32
    %c0_i32_1 = arith.constant 0 : i32
    return %arg0, %c0_i32, %c0_i32_0 : i32, i32, i32
  }
  func.func @transform_5(%arg0: i32) -> (i32, i32) {
    %c0_i32 = arith.constant 0 : i32
    %c0_i32_0 = arith.constant 0 : i32
    %c0_i32_1 = arith.constant 0 : i32
    return %c0_i32, %c0_i32_0 : i32, i32
  }
  func.func @transform_6(%arg0: i32) -> (i32, i32) {
    %c0_i32 = arith.constant 0 : i32
    %c0_i32_0 = arith.constant 0 : i32
    %c0_i32_1 = arith.constant 0 : i32
    return %c0_i32, %c0_i32_0 : i32, i32
  }
  func.func @transform_7(%arg0: i32) -> (i32, i32) {
    %c0_i32 = arith.constant 0 : i32
    %c0_i32_0 = arith.constant 0 : i32
    %c0_i32_1 = arith.constant 0 : i32
    return %c0_i32, %c0_i32_0 : i32, i32
  }
  func.func @transform_8(%arg0: i32) -> (i32, i32) {
    %c0_i32 = arith.constant 0 : i32
    %c0_i32_0 = arith.constant 0 : i32
    %c0_i32_1 = arith.constant 0 : i32
    return %c0_i32, %c0_i32_0 : i32, i32
  }
  func.func @transform_9(%arg0: i32) -> (i32, i32) {
    %c0_i32 = arith.constant 0 : i32
    %c0_i32_0 = arith.constant 0 : i32
    %c0_i32_1 = arith.constant 0 : i32
    return %c0_i32, %c0_i32_0 : i32, i32
  }
  func.func @transform_10(%arg0: i32) -> (i32, i32) {
    %c0_i32 = arith.constant 0 : i32
    %c0_i32_0 = arith.constant 0 : i32
    %c0_i32_1 = arith.constant 0 : i32
    return %c0_i32, %c0_i32_0 : i32, i32
  }
  func.func @transform_11(%arg0: i32) -> (i32, i32, i32) {
    %c0_i32 = arith.constant 0 : i32
    %c0_i32_0 = arith.constant 0 : i32
    %c0_i32_1 = arith.constant 0 : i32
    return %arg0, %c0_i32, %c0_i32_0 : i32, i32, i32
  }
  func.func @transform_12(%arg0: i32) -> (i32, i32, i32) {
    %c0_i32 = arith.constant 0 : i32
    %c0_i32_0 = arith.constant 0 : i32
    %c0_i32_1 = arith.constant 0 : i32
    return %arg0, %c0_i32, %c0_i32_0 : i32, i32, i32
  }
}

</mosaic_0001>

<llo_original>
// kernel: checkerboard_normal_flow.1
$region0: #{checkerboard_normal_flow.1}
  #allocation0 [shape = 'u32[]', space=smem, size = 0x4, offset = 0x4, fixed_abs, tag = 'smem constant byte address 0x4 - core index']
  #allocation1 [shape = 'u32[72,128]{1,0:T(1,128)}', space=vmem, size = 0x9000, scoped, tag = 'internal scratch']
  %s0 = inlined_call_operand.vmem [shape: f32[2,4,256], index: 0, kind: input, shape index: {}]
  %s1 = inlined_call_operand.vmem [shape: f32[2,3,256], index: 1, kind: input, shape index: {}]
  %s2 = inlined_call_operand.vmem [shape: f32[1,256], index: 2, kind: input, shape index: {}]
  %s3 = inlined_call_operand.vmem [shape: f32[9,256], index: 3, kind: input, shape index: {}]
  %s4 = inlined_call_operand.vmem [shape: f32[2,1,1], index: 4, kind: input, shape index: {}]
  %s5 = inlined_call_operand.vmem [shape: bf16[16,36], index: 5, kind: input, shape index: {}]
  %s6 = inlined_call_operand.vmem [shape: f32[16,1], index: 6, kind: input, shape index: {}]
  %s7 = inlined_call_operand.vmem [shape: bf16[16,144], index: 7, kind: input, shape index: {}]
  %s8 = inlined_call_operand.vmem [shape: f32[16,1], index: 8, kind: input, shape index: {}]
  %s9 = inlined_call_operand.vmem [shape: bf16[6,144], index: 9, kind: input, shape index: {}]
  %s10 = inlined_call_operand.vmem [shape: f32[6,1], index: 10, kind: input, shape index: {}]
  %s11 = inlined_call_operand.vmem [shape: f32[2,3,256], index: 11, kind: output, shape index: {0}]
  %s12 = inlined_call_operand.vmem [shape: f32[2,1,1], index: 12, kind: output, shape index: {1}]
  %13 = xla_tuple %s11, %s12
  %s14 = sld [smem:[#allocation0]]
  $region85: #{checkerboard_normal_flow.1} parent=0
    _
  %s16 = ssub.s32 1, %s14
  %s17 = scalar_select 0, %s16, %s14
  loop: start=0, step=1, limit=4
  $region2: #{checkerboard_normal_flow.1} parent=0 // loop_pre_header
    _
  $region3: #{checkerboard_normal_flow.1} parent=0 // loop_header
    %s19 = sphi 0, %s23
    %p20 = scmp.ge.s32.totalorder %s19, 4
    %s29 = sphi 0, %s31
    %s32 = sphi 0, %s29
    %s33 = sphi 0, %s32
    %s49 = sphi 0, %s33
    %s55 = sphi 0, %s57
    %s58 = sphi 0, %s55
    %s59 = sphi 0, %s58
    %s75 = sphi 0, %s59
    %s79 = sphi 0, %s79
    %s81 = sphi 0, %s79
    %s82 = sphi 0, %s81
    %s96 = sphi 0, %s82
    %s100 = sphi 0, %s100
    %s102 = sphi 0, %s100
    %s103 = sphi 0, %s102
    %s117 = sphi 0, %s103
    %s123 = sphi 0, %s125
    %s126 = sphi 0, %s123
    %s127 = sphi 0, %s126
    %s143 = sphi 0, %s127
    %s147 = sphi 0, %s147
    %s149 = sphi 0, %s147
    %s150 = sphi 0, %s149
    %s164 = sphi 0, %s150
    %s168 = sphi 0, %s168
    %s170 = sphi 0, %s168
    %s171 = sphi 0, %s170
    %s185 = sphi 0, %s171
    %s189 = sphi 0, %s189
    %s191 = sphi 0, %s189
    %s192 = sphi 0, %s191
    %s206 = sphi 0, %s192
    %s210 = sphi 0, %s210
    %s212 = sphi 0, %s210
    %s213 = sphi 0, %s212
    %s227 = sphi 0, %s213
    %s231 = sphi 0, %s231
    %s233 = sphi 0, %s231
    %s234 = sphi 0, %s233
    %s248 = sphi 0, %s234
    %s252 = sphi 0, %s252
    %s254 = sphi 0, %s252
    %s255 = sphi 0, %s254
    %s269 = sphi 0, %s255
    %s275 = sphi 0, %s277
    %s278 = sphi 0, %s275
    %s279 = sphi 0, %s278
    %s295 = sphi 0, %s279
    %s301 = sphi 0, %s303
    %s304 = sphi 0, %s301
    %s305 = sphi 0, %s304
    %s321 = sphi 0, %s305
  $region4: #{checkerboard_normal_flow.1} parent=0 // loop_header_branch
    %22 = sbr.rel (%p20) target = $region8
  $region5: #{checkerboard_normal_flow.1} parent=0 // loop_body
    %s24 = ssub.s32 %s19, 1
    %s25 = ssub.s32 %s19, 2
    %s26 = sadd.s32 %s19, 1
    %s27 = ssub.s32 %s19, %s26
    %p28 = scmp.eq.s32.totalorder %s27, 0
    %s30 = sadd.s32 %s29, 1
    %s31 = scalar_select %p28, %s29, %s30
    %p34 = pneg %p28
    %p35 = scmp.eq.s32.totalorder %s19, 1
    %p36 = por %p34, %p35
    %p37 = scmp.ne.s32.totalorder %s29, %s32
    %p38 = scmp.eq.s32.totalorder %s19, 0
    %p39 = por %p37, %p38
    %p40 = scmp.ne.s32.totalorder %s29, %s32
    %p41 = scmp.eq.s32.totalorder %s24, 1
    %p42 = por %p40, %p41
    %p43 = scmp.ne.s32.totalorder %s32, %s33
    %p44 = scmp.eq.s32.totalorder %s24, 0
    %p45 = por %p43, %p44
    %p46 = scmp.ne.s32.totalorder %s32, %s33
    %p47 = scmp.eq.s32.totalorder %s25, 1
    %p48 = por %p46, %p47
    %p50 = scmp.ne.s32.totalorder %s33, %s49
    %p51 = scmp.eq.s32.totalorder %s25, 0
    %p52 = por %p50, %p51
    %s53 = ssub.s32 %s19, %s26
    %p54 = scmp.eq.s32.totalorder %s53, 0
    %s56 = sadd.s32 %s55, 1
    %s57 = scalar_select %p54, %s55, %s56
    %p60 = pneg %p54
    %p61 = scmp.eq.s32.totalorder %s19, 1
    %p62 = por %p60, %p61
    %p63 = scmp.ne.s32.totalorder %s55, %s58
    %p64 = scmp.eq.s32.totalorder %s19, 0
    %p65 = por %p63, %p64
    %p66 = scmp.ne.s32.totalorder %s55, %s58
    %p67 = scmp.eq.s32.totalorder %s24, 1
    %p68 = por %p66, %p67
    %p69 = scmp.ne.s32.totalorder %s58, %s59
    %p70 = scmp.eq.s32.totalorder %s24, 0
    %p71 = por %p69, %p70
    %p72 = scmp.ne.s32.totalorder %s58, %s59
    %p73 = scmp.eq.s32.totalorder %s25, 1
    %p74 = por %p72, %p73
    %p76 = scmp.ne.s32.totalorder %s59, %s75
    %p77 = scmp.eq.s32.totalorder %s25, 0
    %p78 = por %p76, %p77
    %s80 = sadd.s32 %s79, 1
    %p83 = scmp.eq.s32.totalorder %s19, 1
    %p84 = scmp.ne.s32.totalorder %s79, %s81
    %p85 = scmp.eq.s32.totalorder %s19, 0
    %p86 = por %p84, %p85
    %p87 = scmp.ne.s32.totalorder %s79, %s81
    %p88 = scmp.eq.s32.totalorder %s24, 1
    %p89 = por %p87, %p88
    %p90 = scmp.ne.s32.totalorder %s81, %s82
    %p91 = scmp.eq.s32.totalorder %s24, 0
    %p92 = por %p90, %p91
    %p93 = scmp.ne.s32.totalorder %s81, %s82
    %p94 = scmp.eq.s32.totalorder %s25, 1
    %p95 = por %p93, %p94
    %p97 = scmp.ne.s32.totalorder %s82, %s96
    %p98 = scmp.eq.s32.totalorder %s25, 0
    %p99 = por %p97, %p98
    %s101 = sadd.s32 %s100, 1
    %p104 = scmp.eq.s32.totalorder %s19, 1
    %p105 = scmp.ne.s32.totalorder %s100, %s102
    %p106 = scmp.eq.s32.totalorder %s19, 0
    %p107 = por %p105, %p106
    %p108 = scmp.ne.s32.totalorder %s100, %s102
    %p109 = scmp.eq.s32.totalorder %s24, 1
    %p110 = por %p108, %p109
    %p111 = scmp.ne.s32.totalorder %s102, %s103
    %p112 = scmp.eq.s32.totalorder %s24, 0
    %p113 = por %p111, %p112
    %p114 = scmp.ne.s32.totalorder %s102, %s103
    %p115 = scmp.eq.s32.totalorder %s25, 1
    %p116 = por %p114, %p115
    %p118 = scmp.ne.s32.totalorder %s103, %s117
    %p119 = scmp.eq.s32.totalorder %s25, 0
    %p120 = por %p118, %p119
    %s121 = ssub.s32 %s19, %s26
    %p122 = scmp.eq.s32.totalorder %s121, 0
    %s124 = sadd.s32 %s123, 1
    %s125 = scalar_select %p122, %s123, %s124
    %p128 = pneg %p122
    %p129 = scmp.eq.s32.totalorder %s19, 1
    %p130 = por %p128, %p129
    %p131 = scmp.ne.s32.totalorder %s123, %s126
    %p132 = scmp.eq.s32.totalorder %s19, 0
    %p133 = por %p131, %p132
    %p134 = scmp.ne.s32.totalorder %s123, %s126
    %p135 = scmp.eq.s32.totalorder %s24, 1
    %p136 = por %p134, %p135
    %p137 = scmp.ne.s32.totalorder %s126, %s127
    %p138 = scmp.eq.s32.totalorder %s24, 0
    %p139 = por %p137, %p138
    %p140 = scmp.ne.s32.totalorder %s126, %s127
    %p141 = scmp.eq.s32.totalorder %s25, 1
    %p142 = por %p140, %p141
    %p144 = scmp.ne.s32.totalorder %s127, %s143
    %p145 = scmp.eq.s32.totalorder %s25, 0
    %p146 = por %p144, %p145
    %s148 = sadd.s32 %s147, 1
    %p151 = scmp.eq.s32.totalorder %s19, 1
    %p152 = scmp.ne.s32.totalorder %s147, %s149
    %p153 = scmp.eq.s32.totalorder %s19, 0
    %p154 = por %p152, %p153
    %p155 = scmp.ne.s32.totalorder %s147, %s149
    %p156 = scmp.eq.s32.totalorder %s24, 1
    %p157 = por %p155, %p156
    %p158 = scmp.ne.s32.totalorder %s149, %s150
    %p159 = scmp.eq.s32.totalorder %s24, 0
    %p160 = por %p158, %p159
    %p161 = scmp.ne.s32.totalorder %s149, %s150
    %p162 = scmp.eq.s32.totalorder %s25, 1
    %p163 = por %p161, %p162
    %p165 = scmp.ne.s32.totalorder %s150, %s164
    %p166 = scmp.eq.s32.totalorder %s25, 0
    %p167 = por %p165, %p166
    %s169 = sadd.s32 %s168, 1
    %p172 = scmp.eq.s32.totalorder %s19, 1
    %p173 = scmp.ne.s32.totalorder %s168, %s170
    %p174 = scmp.eq.s32.totalorder %s19, 0
    %p175 = por %p173, %p174
    %p176 = scmp.ne.s32.totalorder %s168, %s170
    %p177 = scmp.eq.s32.totalorder %s24, 1
    %p178 = por %p176, %p177
    %p179 = scmp.ne.s32.totalorder %s170, %s171
    %p180 = scmp.eq.s32.totalorder %s24, 0
    %p181 = por %p179, %p180
    %p182 = scmp.ne.s32.totalorder %s170, %s171
    %p183 = scmp.eq.s32.totalorder %s25, 1
    %p184 = por %p182, %p183
    %p186 = scmp.ne.s32.totalorder %s171, %s185
    %p187 = scmp.eq.s32.totalorder %s25, 0
    %p188 = por %p186, %p187
    %s190 = sadd.s32 %s189, 1
    %p193 = scmp.eq.s32.totalorder %s19, 1
    %p194 = scmp.ne.s32.totalorder %s189, %s191
    %p195 = scmp.eq.s32.totalorder %s19, 0
    %p196 = por %p194, %p195
    %p197 = scmp.ne.s32.totalorder %s189, %s191
    %p198 = scmp.eq.s32.totalorder %s24, 1
    %p199 = por %p197, %p198
    %p200 = scmp.ne.s32.totalorder %s191, %s192
    %p201 = scmp.eq.s32.totalorder %s24, 0
    %p202 = por %p200, %p201
    %p203 = scmp.ne.s32.totalorder %s191, %s192
    %p204 = scmp.eq.s32.totalorder %s25, 1
    %p205 = por %p203, %p204
    %p207 = scmp.ne.s32.totalorder %s192, %s206
    %p208 = scmp.eq.s32.totalorder %s25, 0
    %p209 = por %p207, %p208
    %s211 = sadd.s32 %s210, 1
    %p214 = scmp.eq.s32.totalorder %s19, 1
    %p215 = scmp.ne.s32.totalorder %s210, %s212
    %p216 = scmp.eq.s32.totalorder %s19, 0
    %p217 = por %p215, %p216
    %p218 = scmp.ne.s32.totalorder %s210, %s212
    %p219 = scmp.eq.s32.totalorder %s24, 1
    %p220 = por %p218, %p219
    %p221 = scmp.ne.s32.totalorder %s212, %s213
    %p222 = scmp.eq.s32.totalorder %s24, 0
    %p223 = por %p221, %p222
    %p224 = scmp.ne.s32.totalorder %s212, %s213
    %p225 = scmp.eq.s32.totalorder %s25, 1
    %p226 = por %p224, %p225
    %p228 = scmp.ne.s32.totalorder %s213, %s227
    %p229 = scmp.eq.s32.totalorder %s25, 0
    %p230 = por %p228, %p229
    %s232 = sadd.s32 %s231, 1
    %p235 = scmp.eq.s32.totalorder %s19, 1
    %p236 = scmp.ne.s32.totalorder %s231, %s233
    %p237 = scmp.eq.s32.totalorder %s19, 0
    %p238 = por %p236, %p237
    %p239 = scmp.ne.s32.totalorder %s231, %s233
    %p240 = scmp.eq.s32.totalorder %s24, 1
    %p241 = por %p239, %p240
    %p242 = scmp.ne.s32.totalorder %s233, %s234
    %p243 = scmp.eq.s32.totalorder %s24, 0
    %p244 = por %p242, %p243
    %p245 = scmp.ne.s32.totalorder %s233, %s234
    %p246 = scmp.eq.s32.totalorder %s25, 1
    %p247 = por %p245, %p246
    %p249 = scmp.ne.s32.totalorder %s234, %s248
    %p250 = scmp.eq.s32.totalorder %s25, 0
    %p251 = por %p249, %p250
    %s253 = sadd.s32 %s252, 1
    %p256 = scmp.eq.s32.totalorder %s19, 1
    %p257 = scmp.ne.s32.totalorder %s252, %s254
    %p258 = scmp.eq.s32.totalorder %s19, 0
    %p259 = por %p257, %p258
    %p260 = scmp.ne.s32.totalorder %s252, %s254
    %p261 = scmp.eq.s32.totalorder %s24, 1
    %p262 = por %p260, %p261
    %p263 = scmp.ne.s32.totalorder %s254, %s255
    %p264 = scmp.eq.s32.totalorder %s24, 0
    %p265 = por %p263, %p264
    %p266 = scmp.ne.s32.totalorder %s254, %s255
    %p267 = scmp.eq.s32.totalorder %s25, 1
    %p268 = por %p266, %p267
    %p270 = scmp.ne.s32.totalorder %s255, %s269
    %p271 = scmp.eq.s32.totalorder %s25, 0
    %p272 = por %p270, %p271
    %s273 = ssub.s32 %s19, %s26
    %p274 = scmp.eq.s32.totalorder %s273, 0
    %s276 = sadd.s32 %s275, 1
    %s277 = scalar_select %p274, %s275, %s276
    %p280 = pneg %p274
    %p281 = scmp.eq.s32.totalorder %s19, 1
    %p282 = por %p280, %p281
    %p283 = scmp.ne.s32.totalorder %s275, %s278
    %p284 = scmp.eq.s32.totalorder %s19, 0
    %p285 = por %p283, %p284
    %p286 = scmp.ne.s32.totalorder %s275, %s278
    %p287 = scmp.eq.s32.totalorder %s24, 1
    %p288 = por %p286, %p287
    %p289 = scmp.ne.s32.totalorder %s278, %s279
    %p290 = scmp.eq.s32.totalorder %s24, 0
    %p291 = por %p289, %p290
    %p292 = scmp.ne.s32.totalorder %s278, %s279
    %p293 = scmp.eq.s32.totalorder %s25, 1
    %p294 = por %p292, %p293
    %p296 = scmp.ne.s32.totalorder %s279, %s295
    %p297 = scmp.eq.s32.totalorder %s25, 0
    %p298 = por %p296, %p297
    %s299 = ssub.s32 %s19, %s26
    %p300 = scmp.eq.s32.totalorder %s299, 0
    %s302 = sadd.s32 %s301, 1
    %s303 = scalar_select %p300, %s301, %s302
    %p306 = pneg %p300
    %p307 = scmp.eq.s32.totalorder %s19, 1
    %p308 = por %p306, %p307
    %p309 = scmp.ne.s32.totalorder %s301, %s304
    %p310 = scmp.eq.s32.totalorder %s19, 0
    %p311 = por %p309, %p310
    %p312 = scmp.ne.s32.totalorder %s301, %s304
    %p313 = scmp.eq.s32.totalorder %s24, 1
    %p314 = por %p312, %p313
    %p315 = scmp.ne.s32.totalorder %s304, %s305
    %p316 = scmp.eq.s32.totalorder %s24, 0
    %p317 = por %p315, %p316
    %p318 = scmp.ne.s32.totalorder %s304, %s305
    %p319 = scmp.eq.s32.totalorder %s25, 1
    %p320 = por %p318, %p319
    %p322 = scmp.ne.s32.totalorder %s305, %s321
    %p323 = scmp.eq.s32.totalorder %s25, 0
    %p324 = por %p322, %p323
    %p325 = scmp.le.s32.totalorder 1, %s19
    %p326 = scmp.lt.s32.totalorder %s19, 3
    %p327 = pnand %p325, %p326
    %p328 = pneg %p327
    // Predicated region
    $region9: #{checkerboard_normal_flow.1} parent=5 // pred_check
      _
    $region10: #{checkerboard_normal_flow.1} parent=5 // pred_check_branch
      %330 = sbr.rel (%p327) target = $region12
    $region11: #{checkerboard_normal_flow.1} parent=5 // pred_region
      %s331 = ssub.s32 %s19, 1
      // Predicated region
      $region13: #{checkerboard_normal_flow.1} parent=11 // pred_check
        %p332 = pneg %p92
      $region14: #{checkerboard_normal_flow.1} parent=11 // pred_check_branch
        %334 = sbr.rel (%p332) target = $region16
      $region15: #{checkerboard_normal_flow.1} parent=11 // pred_region
        _
      $region16: #{checkerboard_normal_flow.1} parent=11 // pred_fallthru
        _
      // Predicated region
      $region17: #{checkerboard_normal_flow.1} parent=11 // pred_check
        %p335 = pneg %p113
      $region18: #{checkerboard_normal_flow.1} parent=11 // pred_check_branch
        %337 = sbr.rel (%p335) target = $region20
      $region19: #{checkerboard_normal_flow.1} parent=11 // pred_region
        _
      $region20: #{checkerboard_normal_flow.1} parent=11 // pred_fallthru
        _
      // Predicated region
      $region21: #{checkerboard_normal_flow.1} parent=11 // pred_check
        %p338 = pneg %p160
      $region22: #{checkerboard_normal_flow.1} parent=11 // pred_check_branch
        %340 = sbr.rel (%p338) target = $region24
      $region23: #{checkerboard_normal_flow.1} parent=11 // pred_region
        _
      $region24: #{checkerboard_normal_flow.1} parent=11 // pred_fallthru
        _
      // Predicated region
      $region25: #{checkerboard_normal_flow.1} parent=11 // pred_check
        %p341 = pneg %p181
      $region26: #{checkerboard_normal_flow.1} parent=11 // pred_check_branch
        %343 = sbr.rel (%p341) target = $region28
      $region27: #{checkerboard_normal_flow.1} parent=11 // pred_region
        _
      $region28: #{checkerboard_normal_flow.1} parent=11 // pred_fallthru
        _
      // Predicated region
      $region29: #{checkerboard_normal_flow.1} parent=11 // pred_check
        %p344 = pneg %p202
      $region30: #{checkerboard_normal_flow.1} parent=11 // pred_check_branch
        %346 = sbr.rel (%p344) target = $region32
      $region31: #{checkerboard_normal_flow.1} parent=11 // pred_region
        _
      $region32: #{checkerboard_normal_flow.1} parent=11 // pred_fallthru
        _
      // Predicated region
      $region33: #{checkerboard_normal_flow.1} parent=11 // pred_check
        %p347 = pneg %p223
      $region34: #{checkerboard_normal_flow.1} parent=11 // pred_check_branch
        %349 = sbr.rel (%p347) target = $region36
      $region35: #{checkerboard_normal_flow.1} parent=11 // pred_region
        _
      $region36: #{checkerboard_normal_flow.1} parent=11 // pred_fallthru
        _
      // Predicated region
      $region37: #{checkerboard_normal_flow.1} parent=11 // pred_check
        %p350 = pneg %p244
      $region38: #{checkerboard_normal_flow.1} parent=11 // pred_check_branch
        %352 = sbr.rel (%p350) target = $region40
      $region39: #{checkerboard_normal_flow.1} parent=11 // pred_region
        _
      $region40: #{checkerboard_normal_flow.1} parent=11 // pred_fallthru
        _
      // Predicated region
      $region41: #{checkerboard_normal_flow.1} parent=11 // pred_check
        %p353 = pneg %p265
      $region42: #{checkerboard_normal_flow.1} parent=11 // pred_check_branch
        %355 = sbr.rel (%p353) target = $region44
      $region43: #{checkerboard_normal_flow.1} parent=11 // pred_region
        _
      $region44: #{checkerboard_normal_flow.1} parent=11 // pred_fallthru
        _
    $region12: #{checkerboard_normal_flow.1} parent=5 // pred_fallthru
      _
    %p356 = scmp.lt.s32.totalorder %s19, 2
    // Predicated region
    $region45: #{checkerboard_normal_flow.1} parent=5 // pred_check
      %p357 = pneg %p356
    $region46: #{checkerboard_normal_flow.1} parent=5 // pred_check_branch
      %359 = sbr.rel (%p357) target = $region48
    $region47: #{checkerboard_normal_flow.1} parent=5 // pred_region
      // Predicated region
      $region49: #{checkerboard_normal_flow.1} parent=47 // pred_check
        %p360 = pneg %p39
      $region50: #{checkerboard_normal_flow.1} parent=47 // pred_check_branch
        %362 = sbr.rel (%p360) target = $region52
      $region51: #{checkerboard_normal_flow.1} parent=47 // pred_region
        %p363 = scmp.lt.s32.totalorder %s19, 1
        %s364 = scalar_select %p363, %s19, 1
        %s365 = smul.addr %s364, 2
        %s366 = smul.addr %s365, 4
        %s367 = scalar_lea.vmem %s0, %s366
      $region52: #{checkerboard_normal_flow.1} parent=47 // pred_fallthru
        _
      // Predicated region
      $region53: #{checkerboard_normal_flow.1} parent=47 // pred_check
        %p368 = pneg %p65
      $region54: #{checkerboard_normal_flow.1} parent=47 // pred_check_branch
        %370 = sbr.rel (%p368) target = $region56
      $region55: #{checkerboard_normal_flow.1} parent=47 // pred_region
        %p371 = scmp.lt.s32.totalorder %s19, 1
        %s372 = scalar_select %p371, %s19, 1
        %s373 = smul.addr %s372, 2
        %s374 = smul.addr %s373, 4
        %s375 = scalar_lea.vmem %s1, %s374
      $region56: #{checkerboard_normal_flow.1} parent=47 // pred_fallthru
        _
      // Predicated region
      $region57: #{checkerboard_normal_flow.1} parent=47 // pred_check
        %p376 = pneg %p133
      $region58: #{checkerboard_normal_flow.1} parent=47 // pred_check_branch
        %378 = sbr.rel (%p376) target = $region60
      $region59: #{checkerboard_normal_flow.1} parent=47 // pred_region
        %p379 = scmp.lt.s32.totalorder %s19, 1
        %s380 = scalar_select %p379, %s19, 1
        %s381 = scalar_lea.vmem %s4, %s380
      $region60: #{checkerboard_normal_flow.1} parent=47 // pred_fallthru
        _
    $region48: #{checkerboard_normal_flow.1} parent=5 // pred_fallthru
      _
    %p382 = scmp.le.s32.totalorder 1, %s19
    %p383 = scmp.lt.s32.totalorder %s19, 3
    %p384 = pnand %p382, %p383
    %p385 = pneg %p384
    // Predicated region
    $region61: #{checkerboard_normal_flow.1} parent=5 // pred_check
      _
    $region62: #{checkerboard_normal_flow.1} parent=5 // pred_check_branch
      %387 = sbr.rel (%p384) target = $region64
    $region63: #{checkerboard_normal_flow.1} parent=5 // pred_region
      %s388 = ssub.s32 %s19, 1
      %p389 = scmp.lt.s32.totalorder %s24, 1
      %s390 = scalar_select %p389, %s24, 1
      %s391 = smul.addr %s390, 2
      %s392 = smul.addr %s391, 4
      %s393 = scalar_lea.vmem %s0, %s392
      %p394 = pneg %p45
      %p395 = pneg %p42
      %p396 = scmp.lt.s32.totalorder %s24, 1
      %s397 = scalar_select %p396, %s24, 1
      %s398 = smul.addr %s397, 2
      %s399 = smul.addr %s398, 4
      %s400 = scalar_lea.vmem %s1, %s399
      %p401 = pneg %p71
      %p402 = pneg %p68
      %p403 = pneg %p92
      %p404 = pneg %p89
      %p405 = pneg %p113
      %p406 = pneg %p110
      %p407 = scmp.lt.s32.totalorder %s24, 1
      %s408 = scalar_select %p407, %s24, 1
      %s409 = scalar_lea.vmem %s4, %s408
      %p410 = pneg %p139
      %p411 = pneg %p136
      %p412 = pneg %p160
      %p413 = pneg %p157
      %p414 = pneg %p181
      %p415 = pneg %p178
      %p416 = pneg %p202
      %p417 = pneg %p199
      %p418 = pneg %p223
      %p419 = pneg %p220
      %p420 = pneg %p244
      %p421 = pneg %p241
      %p422 = pneg %p265
      %p423 = pneg %p262
      %p424 = pneg %p291
      %p425 = pneg %p288
      %p426 = scmp.lt.s32.totalorder %s24, 1
      %s427 = scalar_select %p426, %s24, 1
      %s428 = smul.addr %s427, 2
      %s429 = smul.addr %s428, 4
      %s430 = scalar_lea.vmem %s11, %s429
      %p431 = pneg %p317
      %p432 = pneg %p314
      %p433 = scmp.lt.s32.totalorder %s24, 1
      %s434 = scalar_select %p433, %s24, 1
      %s435 = scalar_lea.vmem %s12, %s434
      %p436 = scmp.lt.s32.totalorder %s24, 1
      %s437 = scalar_select %p436, %s24, 1
      %s438 = smul.addr %s437, 2
      %s439 = smul.addr %s438, 4
      %s440 = scalar_lea.vmem %s0, %s439
      %p441 = scmp.lt.s32.totalorder %s24, 1
      %s442 = scalar_select %p441, %s24, 1
      %s443 = smul.addr %s442, 2
      %s444 = smul.addr %s443, 4
      %s445 = scalar_lea.vmem %s1, %s444
      %p446 = scmp.lt.s32.totalorder %s24, 1
      %s447 = scalar_select %p446, %s24, 1
      %s448 = scalar_lea.vmem %s4, %s447
      %p449 = scmp.lt.s32.totalorder %s24, 1
      %s450 = scalar_select %p449, %s24, 1
      %s451 = smul.addr %s450, 2
      %s452 = smul.addr %s451, 4
      %s453 = scalar_lea.vmem %s11, %s452
      %p454 = scmp.lt.s32.totalorder %s24, 1
      %s455 = scalar_select %p454, %s24, 1
      %s456 = scalar_lea.vmem %s12, %s455
      %v458 = vld [vmem:[%s440] sm:$0xff]
      %460 = vst [vmem:[#allocation1] ss:$2 sm:$0xff] %v458
      %v461 = vld.sshfl [vmem:[#allocation1] sm:$0xff pattern:$0x75316420]
      %v462 = vld.sshfl [vmem:[#allocation1 + $0x8] sm:$0xff pattern:$0x75316420]
      %465 = vrot.lane.b32.xlu0 %v461, 17
      %v466 = vpop.permute.xlu0 %465
      %467 = vrot.lane.b32.xlu0 %v462, 17
      %v468 = vpop.permute.xlu0 %467
      %v469 = vlaneseq
      %v470 = vand.u32 %v469, 127
      %vm471 = vcmp.lt.s32.totalorder %v470, 17
      %v472 = vsel %vm471, %v466, %v468
      %v473 = vsel %vm471, %v468, %v466
      %v474 = vld [vmem:[%s3] ss:$8 sm:$0x3]
      %v476 = vperm.slane %v474, 0
      %v477 = vperm.slane %v474, 1
      %v480 = vmul.f32 %v473, %v476
      %v481 = vmul.f32 %v472, %v477
      %482 = vst [vmem:[#allocation1] ss:$2 sm:$0xff] %v458
      %v483 = vld.sshfl [vmem:[#allocation1] sm:$0xff pattern:$0x75316420]
      %v484 = vld.sshfl [vmem:[#allocation1 + $0x8] sm:$0xff pattern:$0x75316420]
      %487 = vrot.lane.b32.xlu0 %v483, 16
      %v488 = vpop.permute.xlu0 %487
      %489 = vrot.lane.b32.xlu0 %v484, 16
      %v490 = vpop.permute.xlu0 %489
      %vm491 = vcmp.lt.s32.totalorder %v470, 16
      %v492 = vsel %vm491, %v488, %v490
      %v493 = vsel %vm491, %v490, %v488
      %s494 = scalar_lea.vmem %s3, 1
      %v495 = vld [vmem:[%s494] ss:$8 sm:$0x3]
      %v497 = vperm.slane %v495, 0
      %v498 = vperm.slane %v495, 1
      %v501 = vmul.f32 %v493, %v497
      %v502 = vmul.f32 %v492, %v498
      %503 = vst [vmem:[#allocation1] ss:$2 sm:$0xff] %v458
      %v504 = vld.sshfl [vmem:[#allocation1] sm:$0xff pattern:$0x75316420]
      %v505 = vld.sshfl [vmem:[#allocation1 + $0x8] sm:$0xff pattern:$0x75316420]
      %508 = vrot.lane.b32.xlu0 %v504, 15
      %v509 = vpop.permute.xlu0 %508
      %510 = vrot.lane.b32.xlu0 %v505, 15
      %v511 = vpop.permute.xlu0 %510
      %vm512 = vcmp.lt.s32.totalorder %v470, 15
      %v513 = vsel %vm512, %v509, %v511
      %v514 = vsel %vm512, %v511, %v509
      %s515 = scalar_lea.vmem %s3, 2
      %v516 = vld [vmem:[%s515] ss:$8 sm:$0x3]
      %v518 = vperm.slane %v516, 0
      %v519 = vperm.slane %v516, 1
      %v522 = vmul.f32 %v514, %v518
      %v523 = vmul.f32 %v513, %v519
      %524 = vst [vmem:[#allocation1] ss:$2 sm:$0xff] %v458
      %v525 = vld.sshfl [vmem:[#allocation1] sm:$0xff pattern:$0x75316420]
      %v526 = vld.sshfl [vmem:[#allocation1 + $0x8] sm:$0xff pattern:$0x75316420]
      %529 = vrot.lane.b32.xlu0 %v525, 1
      %v530 = vpop.permute.xlu0 %529
      %531 = vrot.lane.b32.xlu0 %v526, 1
      %v532 = vpop.permute.xlu0 %531
      %vm533 = vcmp.lt.s32.totalorder %v470, 1
      %v534 = vsel %vm533, %v530, %v532
      %v535 = vsel %vm533, %v532, %v530
      %s536 = scalar_lea.vmem %s3, 3
      %v537 = vld [vmem:[%s536] ss:$8 sm:$0x3]
      %v539 = vperm.slane %v537, 0
      %v540 = vperm.slane %v537, 1
      %v543 = vmul.f32 %v535, %v539
      %v544 = vmul.f32 %v534, %v540
      %545 = vst [vmem:[#allocation1] ss:$2 sm:$0xff] %v458
      %v546 = vld.sshfl [vmem:[#allocation1] sm:$0xff pattern:$0x75316420]
      %v547 = vld.sshfl [vmem:[#allocation1 + $0x8] sm:$0xff pattern:$0x75316420]
      %550 = vrot.lane.b32.xlu0 %v546, 127
      %v551 = vpop.permute.xlu0 %550
      %552 = vrot.lane.b32.xlu0 %v547, 127
      %v553 = vpop.permute.xlu0 %552
      %vm554 = vcmp.lt.s32.totalorder %v470, 127
      %v555 = vsel %vm554, %v551, %v553
      %v556 = vsel %vm554, %v553, %v551
      %s557 = scalar_lea.vmem %s3, 5
      %v558 = vld [vmem:[%s557] ss:$8 sm:$0x3]
      %v560 = vperm.slane %v558, 0
      %v561 = vperm.slane %v558, 1
      %v564 = vmul.f32 %v555, %v560
      %v565 = vmul.f32 %v556, %v561
      %566 = vst [vmem:[#allocation1] ss:$2 sm:$0xff] %v458
      %v567 = vld.sshfl [vmem:[#allocation1] sm:$0xff pattern:$0x75316420]
      %v568 = vld.sshfl [vmem:[#allocation1 + $0x8] sm:$0xff pattern:$0x75316420]
      %571 = vrot.lane.b32.xlu0 %v567, 113
      %v572 = vpop.permute.xlu0 %571
      %573 = vrot.lane.b32.xlu0 %v568, 113
      %v574 = vpop.permute.xlu0 %573
      %vm575 = vcmp.lt.s32.totalorder %v470, 113
      %v576 = vsel %vm575, %v572, %v574
      %v577 = vsel %vm575, %v574, %v572
      %s578 = scalar_lea.vmem %s3, 6
      %v579 = vld [vmem:[%s578] ss:$8 sm:$0x3]
      %v581 = vperm.slane %v579, 0
      %v582 = vperm.slane %v579, 1
      %v585 = vmul.f32 %v576, %v581
      %v586 = vmul.f32 %v577, %v582
      %587 = vst [vmem:[#allocation1] ss:$2 sm:$0xff] %v458
      %v588 = vld.sshfl [vmem:[#allocation1] sm:$0xff pattern:$0x75316420]
      %v589 = vld.sshfl [vmem:[#allocation1 + $0x8] sm:$0xff pattern:$0x75316420]
      %592 = vrot.lane.b32.xlu0 %v588, 112
      %v593 = vpop.permute.xlu0 %592
      %594 = vrot.lane.b32.xlu0 %v589, 112
      %v595 = vpop.permute.xlu0 %594
      %vm596 = vcmp.lt.s32.totalorder %v470, 112
      %v597 = vsel %vm596, %v593, %v595
      %v598 = vsel %vm596, %v595, %v593
      %s599 = scalar_lea.vmem %s3, 7
      %v600 = vld [vmem:[%s599] ss:$8 sm:$0x3]
      %v602 = vperm.slane %v600, 0
      %v603 = vperm.slane %v600, 1
      %v606 = vmul.f32 %v597, %v602
      %v607 = vmul.f32 %v598, %v603
      %608 = vst [vmem:[#allocation1] ss:$2 sm:$0xff] %v458
      %v609 = vld.sshfl [vmem:[#allocation1] sm:$0xff pattern:$0x75316420]
      %v610 = vld.sshfl [vmem:[#allocation1 + $0x8] sm:$0xff pattern:$0x75316420]
      %613 = vrot.lane.b32.xlu0 %v609, 111
      %v614 = vpop.permute.xlu0 %613
      %615 = vrot.lane.b32.xlu0 %v610, 111
      %v616 = vpop.permute.xlu0 %615
      %vm617 = vcmp.lt.s32.totalorder %v470, 111
      %v618 = vsel %vm617, %v614, %v616
      %v619 = vsel %vm617, %v616, %v614
      %s620 = scalar_lea.vmem %s3, 16
      %v621 = vld [vmem:[%s620] ss:$8 sm:$0x3]
      %v623 = vperm.slane %v621, 0
      %v624 = vperm.slane %v621, 1
      %v627 = vmul.f32 %v618, %v623
      %v628 = vmul.f32 %v619, %v624
      %v631 = vrot.slane %v501, 4
      %v632 = vrot.slane %v502, 4
      %v637 = vrot.slane %v543, 4
      %v638 = vrot.slane %v544, 4
      %641 = vst [vmem:[#allocation1] ss:$2 sm:$0xff] %v458
      %v642 = vld.sshfl [vmem:[#allocation1] sm:$0xff pattern:$0x75316420]
      %v643 = vld.sshfl [vmem:[#allocation1 + $0x8] sm:$0xff pattern:$0x75316420]
      %v648 = vrot.slane %v564, 4
      %v649 = vrot.slane %v565, 4
      %v654 = vrot.slane %v606, 4
      %v655 = vrot.slane %v607, 4
      %vm658 = vcmask 1043456
      %v659 = vsel %vm658, %v480, %v631
      %v660 = vsel %vm658, %v481, %v632
      %v661 = vsel %vm658, %v522, %v637
      %v662 = vsel %vm658, %v523, %v638
      %v663 = vsel %vm658, %v642, %v648
      %v664 = vsel %vm658, %v643, %v649
      %v665 = vsel %vm658, %v585, %v654
      %v666 = vsel %vm658, %v586, %v655
      %v667 = vpack.c.bf16 %v661, %v659
      %v668 = vpack.c.bf16 %v662, %v660
      %v669 = vpack.c.bf16 %v665, %v663
      %v670 = vpack.c.bf16 %v666, %v664
      %v671 = vpack.c.bf16 %v627, %v627
      %v672 = vpack.c.bf16 %v628, %v628
      %v673 = vld [vmem:[%s5] sm:$0xf]
      %v674 = vld [vmem:[%s5 + $0x4] sm:$0xf]
      %v675 = vld [vmem:[%s6] sm:$0xff]
      %v676 = vld [vmem:[%s6 + $0x8] sm:$0xff]
      %678 = vset.pattern.permute.xlu0 0
      %679 = vperm.xlu0 %678, %v675
      %v680 = vpop.permute.xlu0 %679
      %683 = vset.pattern.permute.xlu0 0
      %684 = vperm.xlu0 %683, %v676
      %v685 = vpop.permute.xlu0 %684
      %v689 = vunpack.c.l.b16 %v673
      %v690 = vunpack.c.l.b16 %v674
      %v691 = vpack.c.b16 %v690, %v689
      %vm692 = vcmask 293888
      %v694 = vsel %vm692, %v691, 0
      %vm696 = vcmask 1041408
      %v698 = vsel %vm696, %v671, 0
      %v701 = vsel %vm696, %v672, 0
      %703 = vmatpush.bf16.msra.mxu0 0
      %704 = vmatpush.bf16.msra.mxu0 0
      %705 = vmatpush.bf16.msra.mxu0 0
      %706 = vmatpush.bf16.msra.mxu0 0
      %707 = vmatpush.bf16.msra.mxu0 0
      %708 = vmatpush.bf16.msra.mxu0 %v698
      %709 = vmatpush.bf16.msra.mxu0 %v669
      %710 = vmatpush.bf16.msra.mxu0 %v667
      %711 = vmatmul.bf16.gmra.mxu0 %v694
      %v712 = vpop.f32.mrf.mxu0
      %v713 = vadd.f32 %v680, %v712
      %v714 = vpop.f32.mrf.mxu0
      %v715 = vadd.f32 %v685, %v714
      %716 = vdwg.mxu0
      %717 = vmatpush.bf16.msra.mxu0 0
      %718 = vmatpush.bf16.msra.mxu0 0
      %719 = vmatpush.bf16.msra.mxu0 0
      %720 = vmatpush.bf16.msra.mxu0 0
      %721 = vmatpush.bf16.msra.mxu0 0
      %722 = vmatpush.bf16.msra.mxu0 %v701
      %723 = vmatpush.bf16.msra.mxu0 %v670
      %724 = vmatpush.bf16.msra.mxu0 %v668
      %725 = vmatmul.bf16.gmra.mxu0 %v694
      %v726 = vpop.f32.mrf.mxu0
      %v727 = vadd.f32 %v680, %v726
      %v728 = vpop.f32.mrf.mxu0
      %v729 = vadd.f32 %v685, %v728
      %730 = vdwg.mxu0
      %v731 = vmul.f32 %v713, 0.01
      %v732 = vmul.f32 %v727, 0.01
      %v733 = vmul.f32 %v715, 0.01
      %v734 = vmul.f32 %v729, 0.01
      %v735 = vmax.f32 %v713, %v731
      %v736 = vmax.f32 %v727, %v732
      %v737 = vmax.f32 %v715, %v733
      %v738 = vmax.f32 %v729, %v734
      %739 = vrot.lane.b32.xlu0 %v735, 17
      %v740 = vpop.permute.xlu0 %739
      %741 = vrot.lane.b32.xlu0 %v737, 17
      %v742 = vpop.permute.xlu0 %741
      %743 = vrot.lane.b32.xlu0 %v736, 17
      %v744 = vpop.permute.xlu0 %743
      %745 = vrot.lane.b32.xlu0 %v738, 17
      %v746 = vpop.permute.xlu0 %745
      %v747 = vsel %vm471, %v740, %v744
      %v748 = vsel %vm471, %v742, %v746
      %v749 = vsel %vm471, %v744, %v740
      %v750 = vsel %vm471, %v746, %v742
      %v751 = vmul.f32 %v749, %v476
      %v752 = vmul.f32 %v747, %v477
      %v753 = vmul.f32 %v750, %v476
      %v754 = vmul.f32 %v748, %v477
      %755 = vrot.lane.b32.xlu0 %v735, 16
      %v756 = vpop.permute.xlu0 %755
      %757 = vrot.lane.b32.xlu0 %v737, 16
      %v758 = vpop.permute.xlu0 %757
      %759 = vrot.lane.b32.xlu0 %v736, 16
      %v760 = vpop.permute.xlu0 %759
      %761 = vrot.lane.b32.xlu0 %v738, 16
      %v762 = vpop.permute.xlu0 %761
      %v763 = vsel %vm491, %v756, %v760
      %v764 = vsel %vm491, %v758, %v762
      %v765 = vsel %vm491, %v760, %v756
      %v766 = vsel %vm491, %v762, %v758
      %v767 = vmul.f32 %v765, %v497
      %v768 = vmul.f32 %v763, %v498
      %v769 = vmul.f32 %v766, %v497
      %v770 = vmul.f32 %v764, %v498
      %771 = vrot.lane.b32.xlu0 %v735, 15
      %v772 = vpop.permute.xlu0 %771
      %773 = vrot.lane.b32.xlu0 %v737, 15
      %v774 = vpop.permute.xlu0 %773
      %775 = vrot.lane.b32.xlu0 %v736, 15
      %v776 = vpop.permute.xlu0 %775
      %777 = vrot.lane.b32.xlu0 %v738, 15
      %v778 = vpop.permute.xlu0 %777
      %v779 = vsel %vm512, %v772, %v776
      %v780 = vsel %vm512, %v774, %v778
      %v781 = vsel %vm512, %v776, %v772
      %v782 = vsel %vm512, %v778, %v774
      %v783 = vmul.f32 %v781, %v518
      %v784 = vmul.f32 %v779, %v519
      %v785 = vmul.f32 %v782, %v518
      %v786 = vmul.f32 %v780, %v519
      %787 = vrot.lane.b32.xlu0 %v735, 1
      %v788 = vpop.permute.xlu0 %787
      %789 = vrot.lane.b32.xlu0 %v737, 1
      %v790 = vpop.permute.xlu0 %789
      %791 = vrot.lane.b32.xlu0 %v736, 1
      %v792 = vpop.permute.xlu0 %791
      %793 = vrot.lane.b32.xlu0 %v738, 1
      %v794 = vpop.permute.xlu0 %793
      %v795 = vsel %vm533, %v788, %v792
      %v796 = vsel %vm533, %v790, %v794
      %v797 = vsel %vm533, %v792, %v788
      %v798 = vsel %vm533, %v794, %v790
      %v799 = vmul.f32 %v797, %v539
      %v800 = vmul.f32 %v795, %v540
      %v801 = vmul.f32 %v798, %v539
      %v802 = vmul.f32 %v796, %v540
      %803 = vrot.lane.b32.xlu0 %v735, 127
      %v804 = vpop.permute.xlu0 %803
      %805 = vrot.lane.b32.xlu0 %v737, 127
      %v806 = vpop.permute.xlu0 %805
      %807 = vrot.lane.b32.xlu0 %v736, 127
      %v808 = vpop.permute.xlu0 %807
      %809 = vrot.lane.b32.xlu0 %v738, 127
      %v810 = vpop.permute.xlu0 %809
      %v811 = vsel %vm554, %v804, %v808
      %v812 = vsel %vm554, %v806, %v810
      %v813 = vsel %vm554, %v808, %v804
      %v814 = vsel %vm554, %v810, %v806
      %v815 = vmul.f32 %v811, %v560
      %v816 = vmul.f32 %v813, %v561
      %v817 = vmul.f32 %v812, %v560
      %v818 = vmul.f32 %v814, %v561
      %819 = vrot.lane.b32.xlu0 %v735, 113
      %v820 = vpop.permute.xlu0 %819
      %821 = vrot.lane.b32.xlu0 %v737, 113
      %v822 = vpop.permute.xlu0 %821
      %823 = vrot.lane.b32.xlu0 %v736, 113
      %v824 = vpop.permute.xlu0 %823
      %825 = vrot.lane.b32.xlu0 %v738, 113
      %v826 = vpop.permute.xlu0 %825
      %v827 = vsel %vm575, %v820, %v824
      %v828 = vsel %vm575, %v822, %v826
      %v829 = vsel %vm575, %v824, %v820
      %v830 = vsel %vm575, %v826, %v822
      %v831 = vmul.f32 %v827, %v581
      %v832 = vmul.f32 %v829, %v582
      %v833 = vmul.f32 %v828, %v581
      %v834 = vmul.f32 %v830, %v582
      %835 = vrot.lane.b32.xlu0 %v735, 112
      %v836 = vpop.permute.xlu0 %835
      %837 = vrot.lane.b32.xlu0 %v737, 112
      %v838 = vpop.permute.xlu0 %837
      %839 = vrot.lane.b32.xlu0 %v736, 112
      %v840 = vpop.permute.xlu0 %839
      %841 = vrot.lane.b32.xlu0 %v738, 112
      %v842 = vpop.permute.xlu0 %841
      %v843 = vsel %vm596, %v836, %v840
      %v844 = vsel %vm596, %v838, %v842
      %v845 = vsel %vm596, %v840, %v836
      %v846 = vsel %vm596, %v842, %v838
      %v847 = vmul.f32 %v843, %v602
      %v848 = vmul.f32 %v845, %v603
      %v849 = vmul.f32 %v844, %v602
      %v850 = vmul.f32 %v846, %v603
      %851 = vrot.lane.b32.xlu0 %v735, 111
      %v852 = vpop.permute.xlu0 %851
      %853 = vrot.lane.b32.xlu0 %v737, 111
      %v854 = vpop.permute.xlu0 %853
      %855 = vrot.lane.b32.xlu0 %v736, 111
      %v856 = vpop.permute.xlu0 %855
      %857 = vrot.lane.b32.xlu0 %v738, 111
      %v858 = vpop.permute.xlu0 %857
      %v859 = vsel %vm617, %v852, %v856
      %v860 = vsel %vm617, %v854, %v858
      %v861 = vsel %vm617, %v856, %v852
      %v862 = vsel %vm617, %v858, %v854
      %v863 = vmul.f32 %v859, %v623
      %v864 = vmul.f32 %v861, %v624
      %v865 = vmul.f32 %v860, %v623
      %v866 = vmul.f32 %v862, %v624
      %v867 = vpack.c.bf16 %v753, %v751
      %v868 = vpack.c.bf16 %v754, %v752
      %v869 = vpack.c.bf16 %v769, %v767
      %v870 = vpack.c.bf16 %v770, %v768
      %v871 = vpack.c.bf16 %v785, %v783
      %v872 = vpack.c.bf16 %v786, %v784
      %v873 = vpack.c.bf16 %v801, %v799
      %v874 = vpack.c.bf16 %v802, %v800
      %v875 = vpack.c.bf16 %v737, %v735
      %v876 = vpack.c.bf16 %v738, %v736
      %v877 = vpack.c.bf16 %v817, %v815
      %v878 = vpack.c.bf16 %v818, %v816
      %v879 = vpack.c.bf16 %v833, %v831
      %v880 = vpack.c.bf16 %v834, %v832
      %v881 = vpack.c.bf16 %v849, %v847
      %v882 = vpack.c.bf16 %v850, %v848
      %v883 = vpack.c.bf16 %v865, %v863
      %v884 = vpack.c.bf16 %v866, %v864
      %v885 = vld [vmem:[%s7] sm:$0xff]
      %v886 = vld [vmem:[%s7 + $0x8] sm:$0xff]
      %v887 = vld [vmem:[%s8] sm:$0xff]
      %v888 = vld [vmem:[%s8 + $0x8] sm:$0xff]
      %890 = vset.pattern.permute.xlu0 0
      %891 = vperm.xlu0 %890, %v887
      %v892 = vpop.permute.xlu0 %891
      %895 = vset.pattern.permute.xlu0 0
      %896 = vperm.xlu0 %895, %v888
      %v897 = vpop.permute.xlu0 %896
      %v901 = vunpack.c.l.b16 %v885
      %v902 = vunpack.c.h.b16 %v885
      %v903 = vunpack.c.l.b16 %v886
      %v904 = vunpack.c.h.b16 %v886
      %v905 = vpack.c.b16 %v903, %v901
      %v906 = vpack.c.b16 %v904, %v902
      %vm908 = vcmask 130048
      %v910 = vsel %vm908, %v906, 0
      %912 = vmatpush.bf16.msra.mxu0 %v881
      %913 = vmatpush.bf16.msra.mxu0 %v879
      %914 = vmatpush.bf16.msra.mxu0 %v877
      %915 = vmatpush.bf16.msra.mxu0 %v875
      %916 = vmatpush.bf16.msra.mxu0 %v873
      %917 = vmatpush.bf16.msra.mxu0 %v871
      %918 = vmatpush.bf16.msra.mxu0 %v869
      %919 = vmatpush.bf16.msra.mxu0 %v867
      %920 = vmatmul.bf16.gmra.mxu0 %v905
      %v921 = vpop.f32.mrf.mxu0
      %v922 = vadd.f32 %v892, %v921
      %v923 = vpop.f32.mrf.mxu0
      %v924 = vadd.f32 %v897, %v923
      %925 = vdwg.mxu0
      %926 = vmatpush.bf16.msra.mxu0 0
      %927 = vmatpush.bf16.msra.mxu0 0
      %928 = vmatpush.bf16.msra.mxu0 0
      %929 = vmatpush.bf16.msra.mxu0 0
      %930 = vmatpush.bf16.msra.mxu0 0
      %931 = vmatpush.bf16.msra.mxu0 0
      %932 = vmatpush.bf16.msra.mxu0 0
      %933 = vmatpush.bf16.msra.mxu0 %v883
      %934 = vmatmul.bf16.gmra.mxu0 %v910
      %v935 = vpop.f32.mrf.mxu0
      %v936 = vadd.f32 %v922, %v935
      %v937 = vpop.f32.mrf.mxu0
      %v938 = vadd.f32 %v924, %v937
      %939 = vdwg.mxu0
      %940 = vmatpush.bf16.msra.mxu0 %v882
      %941 = vmatpush.bf16.msra.mxu0 %v880
      %942 = vmatpush.bf16.msra.mxu0 %v878
      %943 = vmatpush.bf16.msra.mxu0 %v876
      %944 = vmatpush.bf16.msra.mxu0 %v874
      %945 = vmatpush.bf16.msra.mxu0 %v872
      %946 = vmatpush.bf16.msra.mxu0 %v870
      %947 = vmatpush.bf16.msra.mxu0 %v868
      %948 = vmatmul.bf16.gmra.mxu0 %v905
      %v949 = vpop.f32.mrf.mxu0
      %v950 = vadd.f32 %v892, %v949
      %v951 = vpop.f32.mrf.mxu0
      %v952 = vadd.f32 %v897, %v951
      %953 = vdwg.mxu0
      %954 = vmatpush.bf16.msra.mxu0 0
      %955 = vmatpush.bf16.msra.mxu0 0
      %956 = vmatpush.bf16.msra.mxu0 0
      %957 = vmatpush.bf16.msra.mxu0 0
      %958 = vmatpush.bf16.msra.mxu0 0
      %959 = vmatpush.bf16.msra.mxu0 0
      %960 = vmatpush.bf16.msra.mxu0 0
      %961 = vmatpush.bf16.msra.mxu0 %v884
      %962 = vmatmul.bf16.gmra.mxu0 %v910
      %v963 = vpop.f32.mrf.mxu0
      %v964 = vadd.f32 %v950, %v963
      %v965 = vpop.f32.mrf.mxu0
      %v966 = vadd.f32 %v952, %v965
      %967 = vdwg.mxu0
      %v968 = vmul.f32 %v936, 0.01
      %v969 = vmul.f32 %v964, 0.01
      %v970 = vmul.f32 %v938, 0.01
      %v971 = vmul.f32 %v966, 0.01
      %v972 = vmax.f32 %v936, %v968
      %v973 = vmax.f32 %v964, %v969
      %v974 = vmax.f32 %v938, %v970
      %v975 = vmax.f32 %v966, %v971
      %976 = vrot.lane.b32.xlu0 %v972, 17
      %v977 = vpop.permute.xlu0 %976
      %978 = vrot.lane.b32.xlu0 %v974, 17
      %v979 = vpop.permute.xlu0 %978
      %980 = vrot.lane.b32.xlu0 %v973, 17
      %v981 = vpop.permute.xlu0 %980
      %982 = vrot.lane.b32.xlu0 %v975, 17
      %v983 = vpop.permute.xlu0 %982
      %v984 = vsel %vm471, %v977, %v981
      %v985 = vsel %vm471, %v979, %v983
      %v986 = vsel %vm471, %v981, %v977
      %v987 = vsel %vm471, %v983, %v979
      %v988 = vmul.f32 %v986, %v476
      %v989 = vmul.f32 %v984, %v477
      %v990 = vmul.f32 %v987, %v476
      %v991 = vmul.f32 %v985, %v477
      %992 = vrot.lane.b32.xlu0 %v972, 16
      %v993 = vpop.permute.xlu0 %992
      %994 = vrot.lane.b32.xlu0 %v974, 16
      %v995 = vpop.permute.xlu0 %994
      %996 = vrot.lane.b32.xlu0 %v973, 16
      %v997 = vpop.permute.xlu0 %996
      %998 = vrot.lane.b32.xlu0 %v975, 16
      %v999 = vpop.permute.xlu0 %998
      %v1000 = vsel %vm491, %v993, %v997
      %v1001 = vsel %vm491, %v995, %v999
      %v1002 = vsel %vm491, %v997, %v993
      %v1003 = vsel %vm491, %v999, %v995
      %v1004 = vmul.f32 %v1002, %v497
      %v1005 = vmul.f32 %v1000, %v498
      %v1006 = vmul.f32 %v1003, %v497
      %v1007 = vmul.f32 %v1001, %v498
      %1008 = vrot.lane.b32.xlu0 %v972, 15
      %v1009 = vpop.permute.xlu0 %1008
      %1010 = vrot.lane.b32.xlu0 %v974, 15
      %v1011 = vpop.permute.xlu0 %1010
      %1012 = vrot.lane.b32.xlu0 %v973, 15
      %v1013 = vpop.permute.xlu0 %1012
      %1014 = vrot.lane.b32.xlu0 %v975, 15
      %v1015 = vpop.permute.xlu0 %1014
      %v1016 = vsel %vm512, %v1009, %v1013
      %v1017 = vsel %vm512, %v1011, %v1015
      %v1018 = vsel %vm512, %v1013, %v1009
      %v1019 = vsel %vm512, %v1015, %v1011
      %v1020 = vmul.f32 %v1018, %v518
      %v1021 = vmul.f32 %v1016, %v519
      %v1022 = vmul.f32 %v1019, %v518
      %v1023 = vmul.f32 %v1017, %v519
      %1024 = vrot.lane.b32.xlu0 %v972, 1
      %v1025 = vpop.permute.xlu0 %1024
      %1026 = vrot.lane.b32.xlu0 %v974, 1
      %v1027 = vpop.permute.xlu0 %1026
      %1028 = vrot.lane.b32.xlu0 %v973, 1
      %v1029 = vpop.permute.xlu0 %1028
      %1030 = vrot.lane.b32.xlu0 %v975, 1
      %v1031 = vpop.permute.xlu0 %1030
      %v1032 = vsel %vm533, %v1025, %v1029
      %v1033 = vsel %vm533, %v1027, %v1031
      %v1034 = vsel %vm533, %v1029, %v1025
      %v1035 = vsel %vm533, %v1031, %v1027
      %v1036 = vmul.f32 %v1034, %v539
      %v1037 = vmul.f32 %v1032, %v540
      %v1038 = vmul.f32 %v1035, %v539
      %v1039 = vmul.f32 %v1033, %v540
      %1040 = vrot.lane.b32.xlu0 %v972, 127
      %v1041 = vpop.permute.xlu0 %1040
      %1042 = vrot.lane.b32.xlu0 %v974, 127
      %v1043 = vpop.permute.xlu0 %1042
      %1044 = vrot.lane.b32.xlu0 %v973, 127
      %v1045 = vpop.permute.xlu0 %1044
      %1046 = vrot.lane.b32.xlu0 %v975, 127
      %v1047 = vpop.permute.xlu0 %1046
      %v1048 = vsel %vm554, %v1041, %v1045
      %v1049 = vsel %vm554, %v1043, %v1047
      %v1050 = vsel %vm554, %v1045, %v1041
      %v1051 = vsel %vm554, %v1047, %v1043
      %v1052 = vmul.f32 %v1048, %v560
      %v1053 = vmul.f32 %v1050, %v561
      %v1054 = vmul.f32 %v1049, %v560
      %v1055 = vmul.f32 %v1051, %v561
      %1056 = vrot.lane.b32.xlu0 %v972, 113
      %v1057 = vpop.permute.xlu0 %1056
      %1058 = vrot.lane.b32.xlu0 %v974, 113
      %v1059 = vpop.permute.xlu0 %1058
      %1060 = vrot.lane.b32.xlu0 %v973, 113
      %v1061 = vpop.permute.xlu0 %1060
      %1062 = vrot.lane.b32.xlu0 %v975, 113
      %v1063 = vpop.permute.xlu0 %1062
      %v1064 = vsel %vm575, %v1057, %v1061
      %v1065 = vsel %vm575, %v1059, %v1063
      %v1066 = vsel %vm575, %v1061, %v1057
      %v1067 = vsel %vm575, %v1063, %v1059
      %v1068 = vmul.f32 %v1064, %v581
      %v1069 = vmul.f32 %v1066, %v582
      %v1070 = vmul.f32 %v1065, %v581
      %v1071 = vmul.f32 %v1067, %v582
      %1072 = vrot.lane.b32.xlu0 %v972, 112
      %v1073 = vpop.permute.xlu0 %1072
      %1074 = vrot.lane.b32.xlu0 %v974, 112
      %v1075 = vpop.permute.xlu0 %1074
      %1076 = vrot.lane.b32.xlu0 %v973, 112
      %v1077 = vpop.permute.xlu0 %1076
      %1078 = vrot.lane.b32.xlu0 %v975, 112
      %v1079 = vpop.permute.xlu0 %1078
      %v1080 = vsel %vm596, %v1073, %v1077
      %v1081 = vsel %vm596, %v1075, %v1079
      %v1082 = vsel %vm596, %v1077, %v1073
      %v1083 = vsel %vm596, %v1079, %v1075
      %v1084 = vmul.f32 %v1080, %v602
      %v1085 = vmul.f32 %v1082, %v603
      %v1086 = vmul.f32 %v1081, %v602
      %v1087 = vmul.f32 %v1083, %v603
      %1088 = vrot.lane.b32.xlu0 %v972, 111
      %v1089 = vpop.permute.xlu0 %1088
      %1090 = vrot.lane.b32.xlu0 %v974, 111
      %v1091 = vpop.permute.xlu0 %1090
      %1092 = vrot.lane.b32.xlu0 %v973, 111
      %v1093 = vpop.permute.xlu0 %1092
      %1094 = vrot.lane.b32.xlu0 %v975, 111
      %v1095 = vpop.permute.xlu0 %1094
      %v1096 = vsel %vm617, %v1089, %v1093
      %v1097 = vsel %vm617, %v1091, %v1095
      %v1098 = vsel %vm617, %v1093, %v1089
      %v1099 = vsel %vm617, %v1095, %v1091
      %v1100 = vmul.f32 %v1096, %v623
      %v1101 = vmul.f32 %v1098, %v624
      %v1102 = vmul.f32 %v1097, %v623
      %v1103 = vmul.f32 %v1099, %v624
      %v1104 = vpack.c.bf16 %v990, %v988
      %v1105 = vpack.c.bf16 %v991, %v989
      %v1106 = vpack.c.bf16 %v1006, %v1004
      %v1107 = vpack.c.bf16 %v1007, %v1005
      %v1108 = vpack.c.bf16 %v1022, %v1020
      %v1109 = vpack.c.bf16 %v1023, %v1021
      %v1110 = vpack.c.bf16 %v1038, %v1036
      %v1111 = vpack.c.bf16 %v1039, %v1037
      %v1112 = vpack.c.bf16 %v974, %v972
      %v1113 = vpack.c.bf16 %v975, %v973
      %v1114 = vpack.c.bf16 %v1054, %v1052
      %v1115 = vpack.c.bf16 %v1055, %v1053
      %v1116 = vpack.c.bf16 %v1070, %v1068
      %v1117 = vpack.c.bf16 %v1071, %v1069
      %v1118 = vpack.c.bf16 %v1086, %v1084
      %v1119 = vpack.c.bf16 %v1087, %v1085
      %v1120 = vpack.c.bf16 %v1102, %v1100
      %v1121 = vpack.c.bf16 %v1103, %v1101
      %v1122 = vld [vmem:[%s9] sm:$0x77]
      %v1123 = vld [vmem:[%s10] sm:$0x3f]
      %1125 = vset.pattern.permute.xlu0 0
      %1126 = vperm.xlu0 %1125, %v1123
      %v1127 = vpop.permute.xlu0 %1126
      %v1130 = vunpack.c.l.b16 %v1122
      %v1131 = vunpack.c.h.b16 %v1122
      %v1132 = vpack.c.b16 %v1130, %v1130
      %v1133 = vpack.c.b16 %v1131, %v1131
      %v1136 = vsel %vm908, %v1133, 0
      %1138 = vmatpush.bf16.msra.mxu0 %v1118
      %1139 = vmatpush.bf16.msra.mxu0 %v1116
      %1140 = vmatpush.bf16.msra.mxu0 %v1114
      %1141 = vmatpush.bf16.msra.mxu0 %v1112
      %1142 = vmatpush.bf16.msra.mxu0 %v1110
      %1143 = vmatpush.bf16.msra.mxu0 %v1108
      %1144 = vmatpush.bf16.msra.mxu0 %v1106
      %1145 = vmatpush.bf16.msra.mxu0 %v1104
      %1146 = vmatmul.bf16.gmra.mxu0 %v1132
      %v1147 = vpop.f32.mrf.mxu0
      %v1148 = vadd.f32 %v1127, %v1147
      %v1149 = vpop.f32.mrf.mxu0
      %1150 = vdwg.mxu0
      %1151 = vmatpush.bf16.msra.mxu0 0
      %1152 = vmatpush.bf16.msra.mxu0 0
      %1153 = vmatpush.bf16.msra.mxu0 0
      %1154 = vmatpush.bf16.msra.mxu0 0
      %1155 = vmatpush.bf16.msra.mxu0 0
      %1156 = vmatpush.bf16.msra.mxu0 0
      %1157 = vmatpush.bf16.msra.mxu0 0
      %1158 = vmatpush.bf16.msra.mxu0 %v1120
      %1159 = vmatmul.bf16.gmra.mxu0 %v1136
      %v1160 = vpop.f32.mrf.mxu0
      %v1161 = vadd.f32 %v1148, %v1160
      %v1162 = vpop.f32.mrf.mxu0
      %1163 = vdwg.mxu0
      %1164 = vmatpush.bf16.msra.mxu0 %v1119
      %1165 = vmatpush.bf16.msra.mxu0 %v1117
      %1166 = vmatpush.bf16.msra.mxu0 %v1115
      %1167 = vmatpush.bf16.msra.mxu0 %v1113
      %1168 = vmatpush.bf16.msra.mxu0 %v1111
      %1169 = vmatpush.bf16.msra.mxu0 %v1109
      %1170 = vmatpush.bf16.msra.mxu0 %v1107
      %1171 = vmatpush.bf16.msra.mxu0 %v1105
      %1172 = vmatmul.bf16.gmra.mxu0 %v1132
      %v1173 = vpop.f32.mrf.mxu0
      %v1174 = vadd.f32 %v1127, %v1173
      %v1175 = vpop.f32.mrf.mxu0
      %1176 = vdwg.mxu0
      %1177 = vmatpush.bf16.msra.mxu0 0
      %1178 = vmatpush.bf16.msra.mxu0 0
      %1179 = vmatpush.bf16.msra.mxu0 0
      %1180 = vmatpush.bf16.msra.mxu0 0
      %1181 = vmatpush.bf16.msra.mxu0 0
      %1182 = vmatpush.bf16.msra.mxu0 0
      %1183 = vmatpush.bf16.msra.mxu0 0
      %1184 = vmatpush.bf16.msra.mxu0 %v1121
      %1185 = vmatmul.bf16.gmra.mxu0 %v1136
      %v1186 = vpop.f32.mrf.mxu0
      %v1187 = vadd.f32 %v1174, %v1186
      %v1188 = vpop.f32.mrf.mxu0
      %1189 = vdwg.mxu0
      %v1190 = vadd.f32 %v1161, 2.0
      %v1191 = vadd.f32 %v1187, 2.0
      %v1192 = vxor.u32 %v1190, 2147483648
      %v1193 = vxor.u32 %v1191, 2147483648
      %v1194 = vmul.f32 %v1192, 1.442695
      %v1195 = vpow.pop %v1194
      %v1196 = vmul.f32 %v1193, 1.442695
      %v1197 = vpow.pop %v1196
      %v1198 = vadd.f32 %v1195, 1.0
      %v1199 = vadd.f32 %v1197, 1.0
      %v1200 = vrcp.pop %v1198
      %v1201 = vmul.f32 %v1198, %v1200
      %v1202 = vsub.f32 1.0, %v1201
      %v1203 = vmul.f32 %v1200, %v1202
      %v1204 = vadd.f32 %v1200, %v1203
      %vm1205 = vweird.f32 %v1198
      %vm1206 = vweird.f32 %v1200
      %vm1207 = vmor %vm1205, %vm1206
      %v1208 = vsel %vm1207, %v1200, %v1204
      %v1209 = vand.u32 2147483647, %v1198
      %vm1210 = vcmp.eq.f32.partialorder %v1209, 8.507059e+37
      %v1211 = vand.u32 %v1198, 2147483648
      %v1212 = vor.u32 1.1754944e-38, %v1211
      %v1213 = vsel %vm1210, %v1212, %v1208
      %v1214 = vmul.f32 1.0, %v1213
      %v1215 = vrcp.pop %v1199
      %v1216 = vmul.f32 %v1199, %v1215
      %v1217 = vsub.f32 1.0, %v1216
      %v1218 = vmul.f32 %v1215, %v1217
      %v1219 = vadd.f32 %v1215, %v1218
      %vm1220 = vweird.f32 %v1199
      %vm1221 = vweird.f32 %v1215
      %vm1222 = vmor %vm1220, %vm1221
      %v1223 = vsel %vm1222, %v1215, %v1219
      %v1224 = vand.u32 2147483647, %v1199
      %vm1225 = vcmp.eq.f32.partialorder %v1224, 8.507059e+37
      %v1226 = vand.u32 %v1199, 2147483648
      %v1227 = vor.u32 1.1754944e-38, %v1226
      %v1228 = vsel %vm1225, %v1227, %v1223
      %v1229 = vmul.f32 1.0, %v1228
      %v1230 = vld [vmem:[%s445] sm:$0x77]
      %v1231 = vld [vmem:[%s2] sm:$0x3]
      %v1232 = vsub.f32 1.0, %v1231
      %v1234 = vperm.slane %v1231, 0
      %v1235 = vperm.slane %v1231, 1
      %1239 = vst [vmem:[#allocation1] ss:$2 sm:$0xff] %v1230
      %v1240 = vld.sshfl [vmem:[#allocation1] sm:$0xff pattern:$0x75316420]
      %v1241 = vld.sshfl [vmem:[#allocation1 + $0x8] sm:$0xff pattern:$0x75316420]
      %v1244 = vmul.f32 %v1234, %v1240
      %v1245 = vmul.f32 %v1235, %v1241
      %v1247 = vperm.slane %v1232, 0
      %v1248 = vperm.slane %v1232, 1
      %v1251 = vmul.f32 %v1247, %v1161
      %v1252 = vmul.f32 %v1248, %v1187
      %1253 = vst [vmem:[#allocation1] ss:$2 sm:$0xff] %v1230
      %v1254 = vld.sshfl [vmem:[#allocation1] sm:$0xff pattern:$0x75316420]
      %v1255 = vld.sshfl [vmem:[#allocation1 + $0x8] sm:$0xff pattern:$0x75316420]
      %v1258 = vmul.f32 %v1247, %v1254
      %v1259 = vmul.f32 %v1248, %v1255
      %v1260 = vmul.f32 %v1214, 1.442695
      %v1261 = vpow.pop %v1260
      %v1262 = vmul.f32 %v1229, 1.442695
      %v1263 = vpow.pop %v1262
      %v1264 = vmul.f32 %v1258, %v1261
      %v1265 = vmul.f32 %v1259, %v1263
      %v1268 = vrot.slane %v1264, 5
      %v1269 = vrot.slane %v1265, 5
      %v1272 = vadd.f32 %v1251, %v1268
      %v1273 = vadd.f32 %v1252, %v1269
      %v1276 = vrot.slane %v1244, 5
      %v1277 = vrot.slane %v1245, 5
      %v1280 = vadd.f32 %v1272, %v1276
      %v1281 = vadd.f32 %v1273, %v1277
      %v1284 = vrot.slane %v1281, 4
      %v1285 = vsel %vm658, %v1280, %v1284
      %v1286 = vsel %vm658, %v1284, %v1280
      %v1287 = vrot.slane %v1286, 4
      %vm1288 = vcmask 1040384
      %vm1289 = vcmask 1044484
      %vm1290 = vmor %vm1288, %vm1289
      %v1291 = vrot.slane %v1285, 7
      %v1292 = vrot.slane %v1291, 4
      %v1293 = vrot.slane %v1287, 7
      %v1294 = vsel %vm1290, %v1292, %v1293
      %1296 = vst [vmem:[%s453] sm:$0x77] %v1294
      %v1297 = vmul.f32 %v1247, %v1214
      %v1298 = vmul.f32 %v1248, %v1229
      %vm1299 = vcmask 1042432
      %v1300 = vsel %vm1299, %v1297, 0.0
      %v1301 = vsel %vm1299, %v1298, 0.0
      %v1302 = vadd.f32 %v1300, %v1301
      %1303 = vadd.xlane.f32.xlu0 %v1302
      %v1304 = vpop.xlane.xlu0 %1303
      %v1305 = vsel %vm1299, %v1304, 0.0
      %v1306 = vrot.slane %v1305, 4
      %v1307 = vadd.f32 %v1305, %v1306
      %v1308 = vrot.slane %v1307, 2
      %v1309 = vadd.f32 %v1307, %v1308
      %v1310 = vrot.slane %v1309, 1
      %v1311 = vadd.f32 %v1309, %v1310
      %v1312 = vld [vmem:[%s448] sm:$0x1]
      %v1313 = vadd.f32 %v1311, %v1312
      %vm1314 = vcmask 0
      %1315 = vst.msk [vmem:[%s456] sm:$0x1] %vm1314, %v1313
      %p1316 = scmp.lt.s32.totalorder %s24, 1
      %s1317 = scalar_select %p1316, %s24, 1
      %s1318 = smul.addr %s1317, 2
      %s1319 = smul.addr %s1318, 4
      %s1320 = scalar_lea.vmem %s11, %s1319
      %p1321 = scmp.lt.s32.totalorder %s24, 1
      %s1322 = scalar_select %p1321, %s24, 1
      %s1323 = scalar_lea.vmem %s12, %s1322
      // Predicated region
      $region65: #{checkerboard_normal_flow.1} parent=63 // pred_check
        %p1324 = pneg %p288
      $region66: #{checkerboard_normal_flow.1} parent=63 // pred_check_branch
        %1326 = sbr.rel (%p1324) target = $region68
      $region67: #{checkerboard_normal_flow.1} parent=63 // pred_region
        _
      $region68: #{checkerboard_normal_flow.1} parent=63 // pred_fallthru
        _
      // Predicated region
      $region69: #{checkerboard_normal_flow.1} parent=63 // pred_check
        %p1327 = pneg %p314
      $region70: #{checkerboard_normal_flow.1} parent=63 // pred_check_branch
        %1329 = sbr.rel (%p1327) target = $region72
      $region71: #{checkerboard_normal_flow.1} parent=63 // pred_region
        _
      $region72: #{checkerboard_normal_flow.1} parent=63 // pred_fallthru
        _
    $region64: #{checkerboard_normal_flow.1} parent=5 // pred_fallthru
      _
    %p1330 = scmp.le.s32.totalorder 2, %s19
    // Predicated region
    $region73: #{checkerboard_normal_flow.1} parent=5 // pred_check
      %p1331 = pneg %p1330
    $region74: #{checkerboard_normal_flow.1} parent=5 // pred_check_branch
      %1333 = sbr.rel (%p1331) target = $region76
    $region75: #{checkerboard_normal_flow.1} parent=5 // pred_region
      %s1334 = ssub.s32 %s19, 2
      // Predicated region
      $region77: #{checkerboard_normal_flow.1} parent=75 // pred_check
        %p1335 = pneg %p294
      $region78: #{checkerboard_normal_flow.1} parent=75 // pred_check_branch
        %1337 = sbr.rel (%p1335) target = $region80
      $region79: #{checkerboard_normal_flow.1} parent=75 // pred_region
        %p1338 = scmp.lt.s32.totalorder %s25, 1
        %s1339 = scalar_select %p1338, %s25, 1
        %s1340 = smul.addr %s1339, 2
        %s1341 = smul.addr %s1340, 4
        %s1342 = scalar_lea.vmem %s11, %s1341
      $region80: #{checkerboard_normal_flow.1} parent=75 // pred_fallthru
        _
      // Predicated region
      $region81: #{checkerboard_normal_flow.1} parent=75 // pred_check
        %p1343 = pneg %p320
      $region82: #{checkerboard_normal_flow.1} parent=75 // pred_check_branch
        %1345 = sbr.rel (%p1343) target = $region84
      $region83: #{checkerboard_normal_flow.1} parent=75 // pred_region
        %p1346 = scmp.lt.s32.totalorder %s25, 1
        %s1347 = scalar_select %p1346, %s25, 1
        %s1348 = scalar_lea.vmem %s12, %s1347
      $region84: #{checkerboard_normal_flow.1} parent=75 // pred_fallthru
        _
    $region76: #{checkerboard_normal_flow.1} parent=5 // pred_fallthru
      _
  $region6: #{checkerboard_normal_flow.1} parent=0 // loop_footer
    %s23 = sadd.s32 1, %s19
  $region7: #{checkerboard_normal_flow.1} parent=0 // loop_footer_branch
    %18 = sbr.rel target = $region3
  $region8: #{checkerboard_normal_flow.1} parent=0 // loop_exit
    _

</llo_original>
